<compile_context>
chip_gen: v5e
topology: v5e:2x2
jax: 0.10.0
libtpu: 0.0.40
codegen_flags: <defaults>
</compile_context>

<pallas_src>
import math
from functools import partial

import jax
import jax.numpy as jnp
from jax.experimental import pallas as pl
from jax.experimental.pallas import tpu as pltpu

_ACT_DTYPE = jnp.bfloat16


# ----------------------------- helpers -----------------------------

def _round_up(x, m):
    return (x + m - 1) // m * m


def _vmem_capacity_bytes():
    try:
        cap = int(pltpu.get_tpu_info().vmem_capacity_bytes)
        if cap >= 32 * 1024 * 1024:
            return cap
    except Exception:
        pass
    return 64 * 1024 * 1024            # conservative (v7x-sized) default


_VMEM_CAP = _vmem_capacity_bytes()
# leave headroom below physical VMEM (~54 MiB on 64 MiB parts, ~108 MiB on 128 MiB parts)
_VMEM_LIMIT = min(int(_VMEM_CAP * 0.85), 112 * 1024 * 1024)
if _VMEM_CAP >= 96 * 1024 * 1024:       # v5e / v6e (128 MiB VMEM)
    _TM_PREF, _TN_PREF, _TK_PREF = 512, 256, 1024
else:                                   # v7x (64 MiB VMEM)
    _TM_PREF, _TN_PREF, _TK_PREF = 256, 256, 512


def _cparams(*sem):
    return pltpu.CompilerParams(dimension_semantics=sem,
                                vmem_limit_bytes=_VMEM_LIMIT)


def _pick_tile(dim, pref, align):
    """(tile, padded_dim): tile % align == 0, tile | padded_dim, minimal padding
    (instead of padding the dimension up to a multiple of `pref`)."""
    dp0 = _round_up(dim, align)
    if dp0 <= pref:
        return dp0, dp0
    min_t = min(pref, 128)
    best = None
    for extra in range(0, pref + 1, align):
        dp = dp0 + extra
        cand = pref
        while cand >= align and dp % cand:
            cand -= align
        if cand < min_t:
            continue
        if best is None or dp < best[1] or (dp == best[1] and cand > best[0]):
            best = (cand, dp)
        if dp == dp0 and cand == pref:
            break
    if best is None:                    # unreachable given the scan, be safe
        best = (align, dp0)
    return best


def _pack_factor(C, M):
    """Lane-pack factor so the last dim becomes 128 when C < 128."""
    if C >= 128 or 128 % C != 0:
        return 1
    f = 128 // C
    return f if M % f == 0 else 1


def _row_block(Mr, Cl, bytes_per_elem=16, target=4 << 20):
    """Row block for elementwise kernels sized by a ~4 MiB byte budget."""
    cap = max(8, target // max(1, Cl * bytes_per_elem))
    if Mr <= cap:
        return Mr
    best = None
    d = 1
    while d * d <= Mr:
        if Mr % d == 0:
            for c in (d, Mr // d):
                if c <= cap and c % 8 == 0 and (best is None or c > best):
                    best = c
        d += 1
    return best if best is not None else Mr


# ----------------------------- GEMM -----------------------------

def _matmul_kernel(a_ref, b_ref, o_ref, acc_ref):
    @pl.when(pl.program_id(2) == 0)
    def _():
        acc_ref[...] = jnp.zeros_like(acc_ref)

    acc_ref[...] += jnp.dot(a_ref[...], b_ref[...],
                            preferred_element_type=jnp.float32)

    @pl.when(pl.program_id(2) == pl.num_programs(2) - 1)
    def _():
        o_ref[...] = acc_ref[...].astype(o_ref.dtype)


def pallas_matmul(a, b, out_dtype=jnp.float32):
    """GEMM (M,K)@(K,N)->(M,N); bf16 operands on the MXU, f32 accumulation."""
    M, K = a.shape
    K2, N = b.shape
    assert K == K2
    a = a.astype(jnp.bfloat16)
    b = b.astype(jnp.bfloat16)
    tm, Mp = _pick_tile(M, _TM_PREF, 8)
    tn, Np = _pick_tile(N, _TN_PREF, 128)
    tk, Kp = _pick_tile(K, _TK_PREF, 128)
    if (Mp, Kp) != (M, K):
        a = jnp.pad(a, ((0, Mp - M), (0, Kp - K)))
    if (Kp, Np) != (K, N):
        b = jnp.pad(b, ((0, Kp - K), (0, Np - N)))
    out = pl.pallas_call(
        _matmul_kernel,
        out_shape=jax.ShapeDtypeStruct((Mp, Np), out_dtype),
        grid=(Mp // tm, Np // tn, Kp // tk),
        in_specs=[pl.BlockSpec((tm, tk), lambda i, j, k: (i, k)),
                  pl.BlockSpec((tk, tn), lambda i, j, k: (k, j))],
        out_specs=pl.BlockSpec((tm, tn), lambda i, j, k: (i, j)),
        scratch_shapes=[pltpu.VMEM((tm, tn), jnp.float32)],
        compiler_params=_cparams("parallel", "parallel", "arbitrary"),
    )(a, b)
    if (Mp, Np) != (M, N):
        out = out[:M, :N]
    return out


# ----------------------------- BatchNorm (+ residual + ReLU) -----------------------------

def _bn_stats_kernel(x_ref, o_ref):
    @pl.when(pl.program_id(0) == 0)
    def _():
        o_ref[...] = jnp.zeros_like(o_ref)
    xv = x_ref[...].astype(jnp.float32)
    o_ref[0:1, :] += jnp.sum(xv, axis=0, keepdims=True)
    o_ref[1:2, :] += jnp.sum(xv * xv, axis=0, keepdims=True)


def _bn_act_kernel(x_ref, scale_ref, shift_ref, o_ref, *, relu):
    y = x_ref[...].astype(jnp.float32) * scale_ref[...] + shift_ref[...]
    if relu:
        y = jnp.maximum(y, 0.0)
    o_ref[...] = y.astype(o_ref.dtype)


def _bn_act_res_kernel(x_ref, scale_ref, shift_ref, res_ref, o_ref, *, relu):
    y = (x_ref[...].astype(jnp.float32) * scale_ref[...] + shift_ref[...]
         + res_ref[...].astype(jnp.float32))
    if relu:
        y = jnp.maximum(y, 0.0)
    o_ref[...] = y.astype(o_ref.dtype)


def batchnorm_act(x, gamma, beta, residual=None, relu=True, eps=1e-5,
                  out_dtype=None):
    """Training-mode BatchNorm3d (biased batch stats) + optional residual + ReLU.

    Per-channel sum / sum-of-squares are accumulated by a fused Pallas
    reduction over the bf16 activation (single read); the normalization,
    residual add and ReLU are a row-tiled Pallas kernel with (1, C)
    scale/shift blocks.  Channels < 128 are lane-packed to 128."""
    shape = x.shape
    C = shape[-1]
    out_dtype = out_dtype or x.dtype
    M = x.size // C
    f = _pack_factor(C, M)
    Mr, Cl = M // f, C * f
    x2 = x.reshape(Mr, Cl)
    bm = _row_block(Mr, Cl)

    stats = pl.pallas_call(
        _bn_stats_kernel,
        out_shape=jax.ShapeDtypeStruct((2, Cl), jnp.float32),
        grid=(Mr // bm,),
        in_specs=[pl.BlockSpec((bm, Cl), lambda i: (i, 0))],
        out_specs=pl.BlockSpec((2, Cl), lambda i: (0, 0)),
        compiler_params=_cparams("arbitrary"),
    )(x2)
    stats = stats.reshape(2, f, C).sum(axis=1)            # undo lane packing
    mean = stats[0] / M
    var = jnp.maximum(stats[1] / M - mean * mean, 0.0)    # biased (train BN)
    scale = gamma * jax.lax.rsqrt(var + eps)
    shift = beta - mean * scale
    scale_b = jnp.tile(scale, f).reshape(1, Cl).astype(jnp.float32)
    shift_b = jnp.tile(shift, f).reshape(1, Cl).astype(jnp.float32)

    in_specs = [pl.BlockSpec((bm, Cl), lambda i: (i, 0)),
                pl.BlockSpec((1, Cl), lambda i: (0, 0)),
                pl.BlockSpec((1, Cl), lambda i: (0, 0))]
    args = [x2, scale_b, shift_b]
    if residual is not None:
        in_specs.append(pl.BlockSpec((bm, Cl), lambda i: (i, 0)))
        args.append(residual.reshape(Mr, Cl))
        kern = partial(_bn_act_res_kernel, relu=relu)
    else:
        kern = partial(_bn_act_kernel, relu=relu)

    out = pl.pallas_call(
        kern,
        out_shape=jax.ShapeDtypeStruct((Mr, Cl), out_dtype),
        grid=(Mr // bm,),
        in_specs=in_specs,
        out_specs=pl.BlockSpec((bm, Cl), lambda i: (i, 0)),
        compiler_params=_cparams("parallel"),
    )(*args)
    return out.reshape(shape)


# ----------------------------- direct 3x3x3 conv (stride 1, dilated) -----------------------------

def _dconv3x3_kernel(x_ref, w_ref, o_ref, *scratch, Wq, dil, fold):
    """Direct stride-1 dilated 3x3x3 conv for one (sample, Cout-tile) block.

    x_ref : (Dp, R, Cin)  whole padded slab for sample n, each depth plane
            flattened to R rows of sublane-aligned width Wq (Wq % 8 == 0).
    w_ref : fold -> (9, 3*Cin, tco)   (3 depth taps folded into K)
            else -> (27, Cin, tco)
    o_ref : (D, rows, tco), rows = H*Wq (multiple of 8).
    Tap (kh, kw) of output flat row j reads plane row j + (kh*Wq + kw)*dil.
    """
    D, rows, tco = o_ref.shape
    cin = x_ref.shape[-1]

    def compute(d):
        acc = jnp.zeros((rows, tco), jnp.float32)
        if fold:
            xcat = scratch[0]                            # (R, 3*Cin) VMEM
            for kd in range(3):
                xcat[:, kd * cin:(kd + 1) * cin] = x_ref[d + kd * dil]
            for kh in range(3):
                for kw in range(3):
                    off = (kh * Wq + kw) * dil
                    acc = acc + jnp.dot(xcat[pl.ds(off, rows), :],
                                        w_ref[kh * 3 + kw],
                                        preferred_element_type=jnp.float32)
        else:
            for kd in range(3):
                for kh in range(3):
                    for kw in range(3):
                        off = (kh * Wq + kw) * dil
                        acc = acc + jnp.dot(
                            x_ref[d + kd * dil, pl.ds(off, rows), :],
                            w_ref[kd * 9 + kh * 3 + kw],
                            preferred_element_type=jnp.float32)
        o_ref[d] = acc.astype(o_ref.dtype)

    if D <= 8:
        for d in range(D):
            compute(d)
    else:
        def body(d, carry):
            compute(d)
            return carry
        jax.lax.fori_loop(0, D, body, 0)


def _conv3d_3x3_s1(x, w, dilation, out_dtype):
    """Stride-1 dilated 3x3x3 conv, padding == dilation (same spatial size).

    The padded activation slab for a sample is DMA'd to VMEM once (single
    BlockSpec, not 3 views); Cout is tiled so large-layer weights stay small
    in VMEM (important on 64 MiB v7x)."""
    # TODO(synk): for very large volumes the per-sample slab exceeds VMEM;
    # a depth-chunked manual-DMA variant would be needed there.
    N, D, H, W, Cin = x.shape
    Cout = w.shape[0]
    p = int(dilation)
    x = x.astype(jnp.bfloat16)

    Wq = _round_up(W + 2 * p, 8)            # sublane-aligned plane width
    rows = H * Wq                            # output rows per depth plane
    extra_h = -(-2 * p // Wq)                # ceil(2p / Wq)
    Hp = H + 2 * p + extra_h
    R = Hp * Wq
    Dp = D + 2 * p
    xp = jnp.pad(x, ((0, 0), (p, p), (p, p + extra_h), (p, Wq - W - p), (0, 0)))
    xf = xp.reshape(N, Dp, R, Cin)

    fold = (Cin % 128 == 0)                  # lane-aligned depth-tap fold
    if fold:
        wt = jnp.transpose(w, (3, 4, 2, 1, 0)).reshape(9, 3 * Cin, Cout)
    else:
        wt = jnp.transpose(w, (2, 3, 4, 1, 0)).reshape(27, Cin, Cout)
    wt = wt.astype(jnp.bfloat16)

    tco = 256 if (Cout > 256 and Cout % 256 == 0) else Cout
    nco = Cout // tco

    kern = partial(_dconv3x3_kernel, Wq=Wq, dil=p, fold=fold)
    scratch = [pltpu.VMEM((R, 3 * Cin), jnp.bfloat16)] if fold else []

    out = pl.pallas_call(
        kern,
        out_shape=jax.ShapeDtypeStruct((N, D, rows, Cout), out_dtype),
        grid=(N, nco),
        in_specs=[pl.BlockSpec((None, Dp, R, Cin), lambda n, j: (n, 0, 0, 0)),
                  pl.BlockSpec((wt.shape[0], wt.shape[1], tco),
                               lambda n, j: (0, 0, j))],
        out_specs=pl.BlockSpec((None, D, rows, tco), lambda n, j: (n, 0, 0, j)),
        scratch_shapes=scratch,
        compiler_params=_cparams("parallel", "arbitrary"),
    )(xf, wt)

    out = out.reshape(N, D, H, Wq, Cout)[:, :, :, :W, :]
    return out


# ----------------------------- other conv variants -----------------------------

def _conv3d_1x1(x, w, stride, out_dtype):
    sd, sh, sw = stride
    xs = x[:, ::sd, ::sh, ::sw, :]
    N, oD, oH, oW, Cin = xs.shape
    Cout = w.shape[0]
    b = jnp.transpose(w.reshape(Cout, Cin), (1, 0))
    y = pallas_matmul(xs.reshape(-1, Cin), b, out_dtype=out_dtype)
    return y.reshape(N, oD, oH, oW, Cout)


def _conv3d_im2col(x, w, stride, padding, dilation, out_dtype):
    """Generic conv via im2col + GEMM (used for the 7x7x7 stem and the single
    strided 3x3x3 conv)."""
    # TODO(synk): these two convs still materialize the im2col patch tensor in
    # HBM; a direct strided-conv kernel (parity-decomposed input) would remove
    # that extra pass for large volumes.
    N, D, H, W, Cin = x.shape
    Cout, _, kd, kh, kw = w.shape
    sd, sh, sw = stride
    pd, ph, pw = padding
    dd, dh, dw = dilation
    oD = (D + 2 * pd - dd * (kd - 1) - 1) // sd + 1
    oH = (H + 2 * ph - dh * (kh - 1) - 1) // sh + 1
    oW = (W + 2 * pw - dw * (kw - 1) - 1) // sw + 1
    xp = jnp.pad(x.astype(jnp.bfloat16),
                 ((0, 0), (pd, pd), (ph, ph), (pw, pw), (0, 0)))
    patches = []
    for id_ in range(kd):
        for ih in range(kh):
            for iw in range(kw):
                d0, h0, w0 = id_ * dd, ih * dh, iw * dw
                patches.append(xp[:, d0:d0 + sd * (oD - 1) + 1:sd,
                                     h0:h0 + sh * (oH - 1) + 1:sh,
                                     w0:w0 + sw * (oW - 1) + 1:sw, :])
    pat = jnp.stack(patches, axis=4)                    # (N,oD,oH,oW,kt,Cin)
    a = pat.reshape(N * oD * oH * oW, kd * kh * kw * Cin)
    b = jnp.transpose(w, (2, 3, 4, 1, 0)).reshape(kd * kh * kw * Cin, Cout)
    y = pallas_matmul(a, b, out_dtype=out_dtype)
    return y.reshape(N, oD, oH, oW, Cout)


def conv3d(x, w, stride=1, padding=0, dilation=1, out_dtype=None):
    """3D convolution, channels-last activations; w in PyTorch (Cout,Cin,kd,kh,kw)."""
    if isinstance(stride, int):
        stride = (stride,) * 3
    if isinstance(padding, int):
        padding = (padding,) * 3
    if isinstance(dilation, int):
        dilation = (dilation,) * 3
    out_dtype = out_dtype or x.dtype
    Cout, Cin_w, kd, kh, kw = w.shape
    assert x.shape[-1] == Cin_w
    if (kd, kh, kw) == (1, 1, 1) and padding == (0, 0, 0) and dilation == (1, 1, 1):
        return _conv3d_1x1(x, w, stride, out_dtype)
    if ((kd, kh, kw) == (3, 3, 3) and stride == (1, 1, 1)
            and dilation[0] == dilation[1] == dilation[2]
            and padding == dilation):
        return _conv3d_3x3_s1(x, w, dilation[0], out_dtype)
    return _conv3d_im2col(x, w, stride, padding, dilation, out_dtype)


def conv_transpose3d_k2s2(x, w, bias, out_dtype, add_bias=True):
    """ConvTranspose3d(kernel=2, stride=2).  w: PyTorch (Cin, Cout, 2, 2, 2).
    GEMM result and the (2,2,2) interleave stay in bf16; when followed by a
    train-mode BatchNorm the per-channel bias cancels exactly (mean
    subtraction), so the caller may skip it."""
    N, D, H, W, Cin = x.shape
    Cout = w.shape[1]
    a = x.reshape(N * D * H * W, Cin)
    b = jnp.transpose(w, (0, 2, 3, 4, 1)).reshape(Cin, 8 * Cout)
    y = pallas_matmul(a, b, out_dtype=jnp.bfloat16)
    y = y.reshape(N, D, H, W, 2, 2, 2, Cout)
    y = jnp.transpose(y, (0, 1, 4, 2, 5, 3, 6, 7)).reshape(
        N, 2 * D, 2 * H, 2 * W, Cout)
    if add_bias:
        y = y + bias[None, None, None, None, :].astype(y.dtype)
    return y.astype(out_dtype)


# ----------------------------- MaxPool3d(k3, s2, p1) -----------------------------

def _pool_pairmax_kernel(x_ref, o_ref):
    """k=2, stride=1 neighbourhood max over (D,H,W) for one sample.
    Combined with the (2,2,2) block reduction outside, this realises the
    3x3x3 / stride-2 / pad-1 max pool while reading each padded element once."""
    d2, h2, w2, _ = o_ref.shape
    m = x_ref[0:d2, 0:h2, 0:w2, :]
    for a in range(2):
        for b in range(2):
            for c in range(2):
                if a == 0 and b == 0 and c == 0:
                    continue
                m = jnp.maximum(m, x_ref[a:a + d2, b:b + h2, c:c + w2, :])
    o_ref[...] = m


def maxpool3d_k3_s2_p1(x):
    # TODO(synk): for very large stem outputs this whole-sample block would
    # need depth chunking; fine for the sizes exercised here.
    N, D, H, W, C = x.shape
    oD, oH, oW = [(l - 1) // 2 + 1 for l in (D, H, W)]
    pads = [(1, 2 * o - l) for l, o in ((D, oD), (H, oH), (W, oW))]
    xp = jnp.pad(x, ((0, 0),) + tuple(pads) + ((0, 0),),
                 constant_values=-jnp.inf)
    d2, h2, w2 = 2 * oD, 2 * oH, 2 * oW
    pm = pl.pallas_call(
        _pool_pairmax_kernel,
        out_shape=jax.ShapeDtypeStruct((N, d2, h2, w2, C), x.dtype),
        grid=(N,),
        in_specs=[pl.BlockSpec((None,) + xp.shape[1:],
                               lambda n: (n, 0, 0, 0, 0))],
        out_specs=pl.BlockSpec((None, d2, h2, w2, C),
                               lambda n: (n, 0, 0, 0, 0)),
        compiler_params=_cparams("parallel"),
    )(xp)
    # stride-2 (2,2,2) block reduction of the pairwise max (small XLA reduce)
    return pm.reshape(N, oD, 2, oH, 2, oW, 2, C).max(axis=(2, 4, 6))


# ----------------------------- model definition -----------------------------

def basic_block(x, p):
    """MedicalNet BasicBlock (expansion=1)."""
    stride, dilation = p['stride'], p['dilation']
    out = conv3d(x, p['conv1_w'], stride=stride, padding=dilation,
                 dilation=dilation)
    out = batchnorm_act(out, p['bn1_g'], p['bn1_b'], relu=True)
    out = conv3d(out, p['conv2_w'], stride=1, padding=dilation,
                 dilation=dilation)
    if 'ds_w' in p:   # shortcut_type 'B': 1x1x1 conv + BN
        residual = conv3d(x, p['ds_w'], stride=stride, padding=0, dilation=1)
        residual = batchnorm_act(residual, p['ds_g'], p['ds_b'], relu=False)
    else:
        residual = x
    # out = relu(bn2(conv2(out)) + residual), fused in one Pallas call
    out = batchnorm_act(out, p['bn2_g'], p['bn2_b'], residual=residual,
                        relu=True)
    return out


def _kaiming_conv(key, shape):
    # kaiming_normal, mode='fan_out' : std = sqrt(2 / (Cout * prod(kernel)))
    fan_out = shape[0] * shape[2] * shape[3] * shape[4]
    return jax.random.normal(key, shape, jnp.float32) * math.sqrt(2.0 / fan_out)


def init_params(key, layers=(1, 1, 1, 1), num_seg_classes=1):
    keys = iter(jax.random.split(key, 64))
    p = {}
    p['conv1_w'] = _kaiming_conv(next(keys), (64, 1, 7, 7, 7))
    p['bn1_g'] = jnp.ones((64,), jnp.float32)
    p['bn1_b'] = jnp.zeros((64,), jnp.float32)
    inplanes = 64
    cfg = [(64, layers[0], 1, 1), (128, layers[1], 2, 1),
           (256, layers[2], 1, 2), (512, layers[3], 1, 4)]
    layer_params = []
    for planes, nblocks, stride, dilation in cfg:
        blocks = []
        for i in range(nblocks):
            s = stride if i == 0 else 1
            blk = {
                'stride': s, 'dilation': dilation,
                'conv1_w': _kaiming_conv(next(keys), (planes, inplanes, 3, 3, 3)),
                'bn1_g': jnp.ones((planes,), jnp.float32),
                'bn1_b': jnp.zeros((planes,), jnp.float32),
                'conv2_w': _kaiming_conv(next(keys), (planes, planes, 3, 3, 3)),
                'bn2_g': jnp.ones((planes,), jnp.float32),
                'bn2_b': jnp.zeros((planes,), jnp.float32),
            }
            if s != 1 or inplanes != planes:      # shortcut_type 'B'
                blk['ds_w'] = _kaiming_conv(next(keys), (planes, inplanes, 1, 1, 1))
                blk['ds_g'] = jnp.ones((planes,), jnp.float32)
                blk['ds_b'] = jnp.zeros((planes,), jnp.float32)
            inplanes = planes
            blocks.append(blk)
        layer_params.append(blocks)
    p['layers'] = layer_params
    # conv_seg head
    p['seg_ct_w'] = jax.random.normal(next(keys), (512, 32, 2, 2, 2),
                                      jnp.float32) * 0.05
    p['seg_ct_b'] = jnp.zeros((32,), jnp.float32)
    p['seg_bn1_g'] = jnp.ones((32,), jnp.float32)
    p['seg_bn1_b'] = jnp.zeros((32,), jnp.float32)
    p['seg_conv1_w'] = _kaiming_conv(next(keys), (32, 32, 3, 3, 3))
    p['seg_bn2_g'] = jnp.ones((32,), jnp.float32)
    p['seg_bn2_b'] = jnp.zeros((32,), jnp.float32)
    p['seg_conv2_w'] = _kaiming_conv(next(keys), (num_seg_classes, 32, 1, 1, 1))
    return p


def resnet_forward(params, x_ncdhw):
    """Input: PyTorch NCDHW (N, 1, D, H, W). Output: NCDHW segmentation logits."""
    x = jnp.transpose(x_ncdhw, (0, 2, 3, 4, 1)).astype(_ACT_DTYPE)  # -> NDHWC
    x = conv3d(x, params['conv1_w'], stride=2, padding=3, dilation=1)
    x = batchnorm_act(x, params['bn1_g'], params['bn1_b'], relu=True)
    x = maxpool3d_k3_s2_p1(x)
    for blocks in params['layers']:
        for blk in blocks:
            x = basic_block(x, blk)
    # conv_seg: ConvTranspose3d -> BN -> ReLU -> Conv3x3 -> BN -> ReLU -> Conv1x1
    # (ConvTranspose bias is exactly cancelled by the mean subtraction of the
    #  train-mode BN that immediately follows, so it is skipped.)
    x = conv_transpose3d_k2s2(x, params['seg_ct_w'], params['seg_ct_b'],
                              out_dtype=_ACT_DTYPE, add_bias=False)
    x = batchnorm_act(x, params['seg_bn1_g'], params['seg_bn1_b'], relu=True)
    x = conv3d(x, params['seg_conv1_w'], stride=1, padding=1, dilation=1)
    x = batchnorm_act(x, params['seg_bn2_g'], params['seg_bn2_b'], relu=True)
    x = conv3d(x, params['seg_conv2_w'], stride=1, padding=0, dilation=1,
               out_dtype=jnp.float32)
    return jnp.transpose(x, (0, 4, 1, 2, 3)).astype(jnp.float32)  # NCDHW


# TODO(synk): downsample_basic_block (shortcut_type='A' avg-pool/zero-pad path)
# is unused for shortcut_type='B' and is not implemented.

if __name__ == "__main__":
    key = jax.random.PRNGKey(0)
    kp, kx = jax.random.split(key)
    # resnet10 config: BasicBlock (expansion=1), layers=[1, 1, 1, 1]
    params = init_params(kp, layers=(1, 1, 1, 1), num_seg_classes=1)
    x = jax.random.normal(kx, (2, 1, 16, 16, 16), jnp.float32)  # NCDHW, 1 channel
    out = resnet_forward(params, x)
    out = jax.block_until_ready(out)
    assert out.shape == (2, 1, 4, 4, 4), out.shape
    assert bool(jnp.all(jnp.isfinite(out)))
    print("KERNEL_OK")
</pallas_src>

<mosaic_0001>
module attributes {stable_mosaic.version = 11 : i64} {
  func.func @_matmul_kernel(%arg0: i32, %arg1: i32, %arg2: i32, %arg3: memref<256x384xbf16, #tpu.memory_space<vmem>>, %arg4: memref<384x128xbf16, #tpu.memory_space<vmem>>, %arg5: memref<256x128xbf16, #tpu.memory_space<vmem>>, %arg6: memref<256x128xf32, #tpu.memory_space<vmem>>) attributes {dimension_semantics = [#tpu.dimension_semantics<parallel>, #tpu.dimension_semantics<parallel>, #tpu.dimension_semantics<arbitrary>], iteration_bounds = array<i64: 4, 1, 1>, scalar_prefetch = 0 : i64, scratch_operands = 1 : i64, tpu.core_type = #tpu.core_type<tc>, window_params = [{transform_indices = @transform_0, window_bounds = array<i64: 256, 384>}, {transform_indices = @transform_1, window_bounds = array<i64: 384, 128>}, {transform_indices = @transform_2, window_bounds = array<i64: 256, 128>}]} {
    %c0_i32 = arith.constant 0 : i32
    %0 = arith.cmpi eq, %arg2, %c0_i32 : i32
    %1 = arith.extui %0 : i1 to i32
    %c0_i32_0 = arith.constant 0 : i32
    %2 = arith.cmpi ne, %1, %c0_i32_0 : i32
    scf.if %2 {
      %cst_10 = arith.constant 0.000000e+00 : f32
      %12 = vector.broadcast %cst_10 : f32 to vector<256x128xf32>
      %c0_11 = arith.constant 0 : index
      %c0_12 = arith.constant 0 : index
      %13 = vector.load %arg6[%c0_11, %c0_12] : memref<256x128xf32, #tpu.memory_space<vmem>>, vector<256x128xf32>
      tpu.vector_store %arg6[%c0_11, %c0_12], %12 {strides = array<i32>} : memref<256x128xf32, #tpu.memory_space<vmem>>, vector<256x128xf32>,
    } else {
    }
    %c0 = arith.constant 0 : index
    %c0_1 = arith.constant 0 : index
    %3 = vector.load %arg6[%c0, %c0_1] : memref<256x128xf32, #tpu.memory_space<vmem>>, vector<256x128xf32>
    %c0_2 = arith.constant 0 : index
    %c0_3 = arith.constant 0 : index
    %4 = vector.load %arg3[%c0_2, %c0_3] : memref<256x384xbf16, #tpu.memory_space<vmem>>, vector<256x384xbf16>
    %c0_4 = arith.constant 0 : index
    %c0_5 = arith.constant 0 : index
    %5 = vector.load %arg4[%c0_4, %c0_5] : memref<384x128xbf16, #tpu.memory_space<vmem>>, vector<384x128xbf16>
    %cst = arith.constant dense<0.000000e+00> : vector<256x128xf32>
    %6 = tpu.matmul %4, %5, %cst {dimension_numbers = #tpu.dot_dimension_numbers<[1], [0], [0], [1], [0, 0, 1, 1], [], []>} : vector<256x384xbf16>, vector<384x128xbf16>, vector<256x128xf32> -> vector<256x128xf32>
    %7 = arith.addf %3, %6 : vector<256x128xf32>
    %c0_6 = arith.constant 0 : index
    %c0_7 = arith.constant 0 : index
    %8 = vector.load %arg6[%c0_6, %c0_7] : memref<256x128xf32, #tpu.memory_space<vmem>>, vector<256x128xf32>
    tpu.vector_store %arg6[%c0_6, %c0_7], %7 {strides = array<i32>} : memref<256x128xf32, #tpu.memory_space<vmem>>, vector<256x128xf32>,
    %c0_i32_8 = arith.constant 0 : i32
    %9 = arith.cmpi eq, %arg2, %c0_i32_8 : i32
    %10 = arith.extui %9 : i1 to i32
    %c0_i32_9 = arith.constant 0 : i32
    %11 = arith.cmpi ne, %10, %c0_i32_9 : i32
    scf.if %11 {
      %c0_10 = arith.constant 0 : index
      %c0_11 = arith.constant 0 : index
      %12 = vector.load %arg6[%c0_10, %c0_11] : memref<256x128xf32, #tpu.memory_space<vmem>>, vector<256x128xf32>
      %13 = arith.truncf %12 : vector<256x128xf32> to vector<256x128xbf16>
      %c0_12 = arith.constant 0 : index
      %c0_13 = arith.constant 0 : index
      %14 = vector.load %arg5[%c0_12, %c0_13] : memref<256x128xbf16, #tpu.memory_space<vmem>>, vector<256x128xbf16>
      tpu.vector_store %arg5[%c0_12, %c0_13], %13 {strides = array<i32>} : memref<256x128xbf16, #tpu.memory_space<vmem>>, vector<256x128xbf16>,
    } else {
    }
    return
  }
  func.func @transform_0(%arg0: i32, %arg1: i32, %arg2: i32) -> (i32, i32) {
    %c0_i32 = arith.constant 0 : i32
    return %arg0, %arg2 : i32, i32
  }
  func.func @transform_1(%arg0: i32, %arg1: i32, %arg2: i32) -> (i32, i32) {
    %c0_i32 = arith.constant 0 : i32
    return %arg2, %arg1 : i32, i32
  }
  func.func @transform_2(%arg0: i32, %arg1: i32, %arg2: i32) -> (i32, i32) {
    %c0_i32 = arith.constant 0 : i32
    return %arg0, %arg1 : i32, i32
  }
}

</mosaic_0001>

<llo_original>
// kernel: tpu_custom_call.1
$region0: #{tpu_custom_call.1}
  #allocation0 [shape = 'u32[]', space=smem, size = 0x4, offset = 0x4, fixed_abs, tag = 'smem constant byte address 0x4 - core index']
  #allocation1 [shape = 'u32[72,128]{1,0:T(1,128)}', space=vmem, size = 0x9000, scoped, tag = 'internal scratch']
  #allocation2 [shape = 'f32[256,128]{1,0:T(8,128)}', space=vmem, size = 0x20000, scoped, tag = 'scratch operand']
  %s0 = inlined_call_operand.hbm [shape: bf16[1024,384], index: 0, kind: input, shape index: {}]
  %s1 = inlined_call_operand.hbm [shape: bf16[384,128], index: 1, kind: input, shape index: {}]
  %s2 = inlined_call_operand.hbm [shape: bf16[1024,128], index: 2, kind: output, shape index: {}]
  %s3 = sld [smem:[#allocation0]]
  $region57: #{tpu_custom_call.1} parent=0
    _
  %s5 = ssub.s32 1, %s3
  %s6 = scalar_select 0, %s5, %s3
  $region1: #{tpu_custom_call.1} parent=0
    #allocation3 [shape = 'u8[393216]{0}', space=vmem, size = 0x60000, scoped, tag = 'input window, operand 0']
    #allocation4 [shape = 's32[2]{0}', space=sflag, size = 0x8, scoped, tag = 'scoped memory for tpu_custom_call.1']
    #allocation5 [shape = 's32[2]{0}', space=sflag, size = 0x8, scoped, tag = 'scoped memory for tpu_custom_call.1']
    #allocation6 [shape = 'u8[98304]{0}', space=vmem, size = 0x18000, scoped, tag = 'input window, operand 1, single buffered']
    #allocation7 [shape = 's32[1]{0}', space=sflag, size = 0x4, scoped, tag = 'scoped memory for tpu_custom_call.1']
    #allocation8 [shape = 'u8[131072]{0}', space=vmem, size = 0x20000, scoped, tag = 'output window, operand 0']
    %7 = vsyncpa [#allocation4], 0
    %s8 = scalar_lea.sflag [#allocation4], 1
    %9 = vsyncpa %s8, 0
    %10 = vsyncpa [#allocation7], 0
    %11 = vsyncpa [#allocation5], 0
    %s12 = scalar_lea.sflag [#allocation5], 1
    %13 = vsyncpa %s12, 0
    loop: start=0, step=1, limit=6
    $region2: #{tpu_custom_call.1} parent=1 // loop_pre_header
      _
    $region3: #{tpu_custom_call.1} parent=1 // loop_header
      %s15 = sphi 0, %s19
      %p16 = scmp.ge.s32.totalorder %s15, 6
      %s22 = sphi 0, %s41
      %s23 = sphi 0, %s37
      %s24 = sphi 0, %s33
      %s25 = sphi 0, %s22
      %s26 = sphi 0, %s23
      %s27 = sphi 0, %s24
      %s28 = sphi 0, %s25
      %s29 = sphi 0, %s26
      %s30 = sphi 0, %s27
      %s46 = sphi 0, %s48
      %s49 = sphi 0, %s46
      %s50 = sphi 0, %s49
      %s66 = sphi 0, %s50
      %s74 = sphi 0, %s76
      %s77 = sphi 0, %s74
      %s78 = sphi 0, %s77
      %s94 = sphi 0, %s78
      %s102 = sphi 0, %s104
      %s105 = sphi 0, %s102
      %s106 = sphi 0, %s105
      %s122 = sphi 0, %s106
    $region4: #{tpu_custom_call.1} parent=1 // loop_header_branch
      %18 = sbr.rel (%p16) target = $region8
    $region5: #{tpu_custom_call.1} parent=1 // loop_body
      %s20 = ssub.s32 %s15, 1
      %s21 = ssub.s32 %s15, 2
      %s31 = sadd.s32 1, %s24
      %p32 = scmp.ge.s32.totalorder %s31, 1
      %s33 = scalar_select %p32, 0, %s31
      %s34 = sadd.s32 1, %s23
      %s35 = scalar_select %p32, %s34, %s23
      %p36 = scmp.ge.s32.totalorder %s35, 1
      %s37 = scalar_select %p36, 0, %s35
      %s38 = sadd.s32 1, %s22
      %s39 = scalar_select %p36, %s38, %s22
      %p40 = scmp.ge.s32.totalorder %s39, 4
      %s41 = scalar_select %p40, 0, %s39
      %s42 = ssub.s32 %s22, %s41
      %s43 = ssub.s32 %s24, %s33
      %s44 = sor.u32 %s42, %s43
      %p45 = scmp.eq.s32.totalorder %s44, 0
      %s47 = sadd.s32 %s46, 1
      %s48 = scalar_select %p45, %s46, %s47
      %p51 = pneg %p45
      %p52 = scmp.eq.s32.totalorder %s15, 3
      %p53 = por %p51, %p52
      %p54 = scmp.ne.s32.totalorder %s46, %s49
      %p55 = scmp.eq.s32.totalorder %s15, 0
      %p56 = por %p54, %p55
      %p57 = scmp.ne.s32.totalorder %s46, %s49
      %p58 = scmp.eq.s32.totalorder %s20, 3
      %p59 = por %p57, %p58
      %p60 = scmp.ne.s32.totalorder %s49, %s50
      %p61 = scmp.eq.s32.totalorder %s20, 0
      %p62 = por %p60, %p61
      %p63 = scmp.ne.s32.totalorder %s49, %s50
      %p64 = scmp.eq.s32.totalorder %s21, 3
      %p65 = por %p63, %p64
      %p67 = scmp.ne.s32.totalorder %s50, %s66
      %p68 = scmp.eq.s32.totalorder %s21, 0
      %p69 = por %p67, %p68
      %s70 = ssub.s32 %s24, %s33
      %s71 = ssub.s32 %s23, %s37
      %s72 = sor.u32 %s70, %s71
      %p73 = scmp.eq.s32.totalorder %s72, 0
      %s75 = sadd.s32 %s74, 1
      %s76 = scalar_select %p73, %s74, %s75
      %p79 = pneg %p73
      %p80 = scmp.eq.s32.totalorder %s15, 3
      %p81 = por %p79, %p80
      %p82 = scmp.ne.s32.totalorder %s74, %s77
      %p83 = scmp.eq.s32.totalorder %s15, 0
      %p84 = por %p82, %p83
      %p85 = scmp.ne.s32.totalorder %s74, %s77
      %p86 = scmp.eq.s32.totalorder %s20, 3
      %p87 = por %p85, %p86
      %p88 = scmp.ne.s32.totalorder %s77, %s78
      %p89 = scmp.eq.s32.totalorder %s20, 0
      %p90 = por %p88, %p89
      %p91 = scmp.ne.s32.totalorder %s77, %s78
      %p92 = scmp.eq.s32.totalorder %s21, 3
      %p93 = por %p91, %p92
      %p95 = scmp.ne.s32.totalorder %s78, %s94
      %p96 = scmp.eq.s32.totalorder %s21, 0
      %p97 = por %p95, %p96
      %s98 = ssub.s32 %s22, %s41
      %s99 = ssub.s32 %s23, %s37
      %s100 = sor.u32 %s98, %s99
      %p101 = scmp.eq.s32.totalorder %s100, 0
      %s103 = sadd.s32 %s102, 1
      %s104 = scalar_select %p101, %s102, %s103
      %p107 = pneg %p101
      %p108 = scmp.eq.s32.totalorder %s15, 3
      %p109 = por %p107, %p108
      %p110 = scmp.ne.s32.totalorder %s102, %s105
      %p111 = scmp.eq.s32.totalorder %s15, 0
      %p112 = por %p110, %p111
      %p113 = scmp.ne.s32.totalorder %s102, %s105
      %p114 = scmp.eq.s32.totalorder %s20, 3
      %p115 = por %p113, %p114
      %p116 = scmp.ne.s32.totalorder %s105, %s106
      %p117 = scmp.eq.s32.totalorder %s20, 0
      %p118 = por %p116, %p117
      %p119 = scmp.ne.s32.totalorder %s105, %s106
      %p120 = scmp.eq.s32.totalorder %s21, 3
      %p121 = por %p119, %p120
      %p123 = scmp.ne.s32.totalorder %s106, %s122
      %p124 = scmp.eq.s32.totalorder %s21, 0
      %p125 = por %p123, %p124
      %p126 = scmp.le.s32.totalorder 1, %s15
      %p127 = scmp.lt.s32.totalorder %s15, 5
      %p128 = pnand %p126, %p127
      %p129 = pneg %p128
      // Predicated region
      $region9: #{tpu_custom_call.1} parent=5 // pred_check
        _
      $region10: #{tpu_custom_call.1} parent=5 // pred_check_branch
        %131 = sbr.rel (%p128) target = $region12
      $region11: #{tpu_custom_call.1} parent=5 // pred_region
        %s132 = ssub.s32 %s15, 1
        // Predicated region
        $region13: #{tpu_custom_call.1} parent=11 // pred_check
          %p133 = pneg %p90
        $region14: #{tpu_custom_call.1} parent=11 // pred_check_branch
          %135 = sbr.rel (%p133) target = $region16
        $region15: #{tpu_custom_call.1} parent=11 // pred_region
          %s136 = smul.u32 48, %s27
          %138 = vsyncadd [#allocation7], 0
          %s139 = sadd.s32 %s26, %s136
          %s140 = smul.addr %s139, 4
          %s141 = scalar_lea.hbm %s1, %s140
          %s142 = sshll.u32 %s141, 4
          %s143 = int_to_ptr.hbm [resolvable:$true] %s142
          %s144 = sshll.u32 [#allocation6], 4
          %s145 = int_to_ptr.vmem [resolvable:$true] %s144
          %150 = dma.hbm_to_vmem [thread:$0]  %s143, 3072, %s145, [#allocation7], 64, 64, 4
        $region16: #{tpu_custom_call.1} parent=11 // pred_fallthru
          _
      $region12: #{tpu_custom_call.1} parent=5 // pred_fallthru
        _
      %p151 = scmp.lt.s32.totalorder %s15, 4
      // Predicated region
      $region17: #{tpu_custom_call.1} parent=5 // pred_check
        %p152 = pneg %p151
      $region18: #{tpu_custom_call.1} parent=5 // pred_check_branch
        %154 = sbr.rel (%p152) target = $region20
      $region19: #{tpu_custom_call.1} parent=5 // pred_region
        // Predicated region
        $region21: #{tpu_custom_call.1} parent=19 // pred_check
          %p155 = pneg %p56
        $region22: #{tpu_custom_call.1} parent=19 // pred_check_branch
          %157 = sbr.rel (%p155) target = $region24
        $region23: #{tpu_custom_call.1} parent=19 // pred_region
          %s158 = sand.u32 %s46, 1
          %s159 = scalar_lea.sflag [#allocation4], %s158
          %s160 = sand.u32 %s46, 1
          %s161 = smul.addr %s160, 384
          %s162 = scalar_lea.vmem [#allocation3], %s161
          %s163 = smul.u32 32, %s22
          %s164 = smul.u32 3, %s24
          %166 = vsyncadd %s159, 0
          %s167 = smul.addr %s163, 3
          %s168 = sadd.s32 %s164, %s167
          %s169 = smul.addr %s168, 4
          %s170 = scalar_lea.hbm %s0, %s169
          %s171 = sshll.u32 %s170, 4
          %s172 = int_to_ptr.hbm [resolvable:$true] %s171
          %s173 = sshll.u32 %s162, 4
          %s174 = int_to_ptr.vmem [resolvable:$true] %s173
          %179 = dma.hbm_to_vmem [thread:$0]  %s172, 6144, %s174, %s159, 192, 192, 12
        $region24: #{tpu_custom_call.1} parent=19 // pred_fallthru
          _
      $region20: #{tpu_custom_call.1} parent=5 // pred_fallthru
        _
      %p180 = scmp.le.s32.totalorder 1, %s15
      %p181 = scmp.lt.s32.totalorder %s15, 5
      %p182 = pnand %p180, %p181
      %p183 = pneg %p182
      // Predicated region
      $region25: #{tpu_custom_call.1} parent=5 // pred_check
        _
      $region26: #{tpu_custom_call.1} parent=5 // pred_check_branch
        %185 = sbr.rel (%p182) target = $region28
      $region27: #{tpu_custom_call.1} parent=5 // pred_region
        %s186 = ssub.s32 %s15, 1
        %s187 = sand.u32 %s49, 1
        %s188 = scalar_lea.sflag [#allocation4], %s187
        %s189 = sand.u32 %s49, 1
        %s190 = smul.addr %s189, 384
        %s191 = scalar_lea.vmem [#allocation3], %s190
        // Predicated region
        $region29: #{tpu_custom_call.1} parent=27 // pred_check
          %p192 = pneg %p62
        $region30: #{tpu_custom_call.1} parent=27 // pred_check_branch
          %194 = sbr.rel (%p192) target = $region32
        $region31: #{tpu_custom_call.1} parent=27 // pred_region
          %196 = dma.done %s188, 6144
        $region32: #{tpu_custom_call.1} parent=27 // pred_fallthru
          _
        // Predicated region
        $region33: #{tpu_custom_call.1} parent=27 // pred_check
          %p197 = pneg %p90
        $region34: #{tpu_custom_call.1} parent=27 // pred_check_branch
          %199 = sbr.rel (%p197) target = $region36
        $region35: #{tpu_custom_call.1} parent=27 // pred_region
          %201 = dma.done [#allocation7], 3072
        $region36: #{tpu_custom_call.1} parent=27 // pred_fallthru
          _
        %s202 = sand.u32 %s49, 1
        %s203 = scalar_lea.sflag [#allocation4], %s202
        %s204 = sand.u32 %s49, 1
        %s205 = smul.addr %s204, 384
        %s206 = scalar_lea.vmem [#allocation3], %s205
        %p207 = pneg %p62
        %p208 = pneg %p59
        %p209 = pneg %p90
        %p210 = pneg %p87
        %p211 = pneg %p118
        %p212 = pneg %p115
        %s213 = sand.u32 %s105, 1
        %s214 = scalar_lea.sflag [#allocation5], %s213
        %s215 = sand.u32 %s105, 1
        %s216 = smul.addr %s215, 128
        %s217 = scalar_lea.vmem [#allocation8], %s216
        %s218 = smul.u32 32, %s25
        %s219 = smul.u32 3, %s27
        %s220 = smul.u32 48, %s27
        %s221 = smul.u32 32, %s25
        %p222 = scmp.eq.s32.totalorder %s27, 0
        // Predicated region
        $region37: #{tpu_custom_call.1} parent=27 // pred_check
          %p223 = pneg %p222
        $region38: #{tpu_custom_call.1} parent=27 // pred_check_branch
          %225 = sbr.rel (%p223) target = $region40
        $region39: #{tpu_custom_call.1} parent=27 // pred_region
          %226 = vst [vmem:[#allocation2] sm:$0xff] 0.0
          %227 = vst [vmem:[#allocation2 + $0x8] sm:$0xff] 0.0
          %228 = vst [vmem:[#allocation2 + $0x10] sm:$0xff] 0.0
          %229 = vst [vmem:[#allocation2 + $0x18] sm:$0xff] 0.0
          %230 = vst [vmem:[#allocation2 + $0x20] sm:$0xff] 0.0
          %231 = vst [vmem:[#allocation2 + $0x28] sm:$0xff] 0.0
          %232 = vst [vmem:[#allocation2 + $0x30] sm:$0xff] 0.0
          %233 = vst [vmem:[#allocation2 + $0x38] sm:$0xff] 0.0
          %234 = vst [vmem:[#allocation2 + $0x40] sm:$0xff] 0.0
          %235 = vst [vmem:[#allocation2 + $0x48] sm:$0xff] 0.0
          %236 = vst [vmem:[#allocation2 + $0x50] sm:$0xff] 0.0
          %237 = vst [vmem:[#allocation2 + $0x58] sm:$0xff] 0.0
          %238 = vst [vmem:[#allocation2 + $0x60] sm:$0xff] 0.0
          %239 = vst [vmem:[#allocation2 + $0x68] sm:$0xff] 0.0
          %240 = vst [vmem:[#allocation2 + $0x70] sm:$0xff] 0.0
          %241 = vst [vmem:[#allocation2 + $0x78] sm:$0xff] 0.0
          %242 = vst [vmem:[#allocation2 + $0x80] sm:$0xff] 0.0
          %243 = vst [vmem:[#allocation2 + $0x88] sm:$0xff] 0.0
          %244 = vst [vmem:[#allocation2 + $0x90] sm:$0xff] 0.0
          %245 = vst [vmem:[#allocation2 + $0x98] sm:$0xff] 0.0
          %246 = vst [vmem:[#allocation2 + $0xa0] sm:$0xff] 0.0
          %247 = vst [vmem:[#allocation2 + $0xa8] sm:$0xff] 0.0
          %248 = vst [vmem:[#allocation2 + $0xb0] sm:$0xff] 0.0
          %249 = vst [vmem:[#allocation2 + $0xb8] sm:$0xff] 0.0
          %250 = vst [vmem:[#allocation2 + $0xc0] sm:$0xff] 0.0
          %251 = vst [vmem:[#allocation2 + $0xc8] sm:$0xff] 0.0
          %252 = vst [vmem:[#allocation2 + $0xd0] sm:$0xff] 0.0
          %253 = vst [vmem:[#allocation2 + $0xd8] sm:$0xff] 0.0
          %254 = vst [vmem:[#allocation2 + $0xe0] sm:$0xff] 0.0
          %255 = vst [vmem:[#allocation2 + $0xe8] sm:$0xff] 0.0
          %256 = vst [vmem:[#allocation2 + $0xf0] sm:$0xff] 0.0
          %257 = vst [vmem:[#allocation2 + $0xf8] sm:$0xff] 0.0
        $region40: #{tpu_custom_call.1} parent=27 // pred_fallthru
          _
        %v258 = vld [vmem:[#allocation2] sm:$0xff]
        %v259 = vld [vmem:[#allocation2 + $0x8] sm:$0xff]
        %v260 = vld [vmem:[#allocation2 + $0x10] sm:$0xff]
        %v261 = vld [vmem:[#allocation2 + $0x18] sm:$0xff]
        %v262 = vld [vmem:[#allocation2 + $0x20] sm:$0xff]
        %v263 = vld [vmem:[#allocation2 + $0x28] sm:$0xff]
        %v264 = vld [vmem:[#allocation2 + $0x30] sm:$0xff]
        %v265 = vld [vmem:[#allocation2 + $0x38] sm:$0xff]
        %v266 = vld [vmem:[#allocation2 + $0x40] sm:$0xff]
        %v267 = vld [vmem:[#allocation2 + $0x48] sm:$0xff]
        %v268 = vld [vmem:[#allocation2 + $0x50] sm:$0xff]
        %v269 = vld [vmem:[#allocation2 + $0x58] sm:$0xff]
        %v270 = vld [vmem:[#allocation2 + $0x60] sm:$0xff]
        %v271 = vld [vmem:[#allocation2 + $0x68] sm:$0xff]
        %v272 = vld [vmem:[#allocation2 + $0x70] sm:$0xff]
        %v273 = vld [vmem:[#allocation2 + $0x78] sm:$0xff]
        %v274 = vld [vmem:[#allocation2 + $0x80] sm:$0xff]
        %v275 = vld [vmem:[#allocation2 + $0x88] sm:$0xff]
        %v276 = vld [vmem:[#allocation2 + $0x90] sm:$0xff]
        %v277 = vld [vmem:[#allocation2 + $0x98] sm:$0xff]
        %v278 = vld [vmem:[#allocation2 + $0xa0] sm:$0xff]
        %v279 = vld [vmem:[#allocation2 + $0xa8] sm:$0xff]
        %v280 = vld [vmem:[#allocation2 + $0xb0] sm:$0xff]
        %v281 = vld [vmem:[#allocation2 + $0xb8] sm:$0xff]
        %v282 = vld [vmem:[#allocation2 + $0xc0] sm:$0xff]
        %v283 = vld [vmem:[#allocation2 + $0xc8] sm:$0xff]
        %v284 = vld [vmem:[#allocation2 + $0xd0] sm:$0xff]
        %v285 = vld [vmem:[#allocation2 + $0xd8] sm:$0xff]
        %v286 = vld [vmem:[#allocation2 + $0xe0] sm:$0xff]
        %v287 = vld [vmem:[#allocation2 + $0xe8] sm:$0xff]
        %v288 = vld [vmem:[#allocation2 + $0xf0] sm:$0xff]
        %v289 = vld [vmem:[#allocation2 + $0xf8] sm:$0xff]
        %v290 = vld [vmem:[%s191] sm:$0xff]
        %v291 = vld [vmem:[%s191 + $0x8] sm:$0xf]
        %v292 = vld [vmem:[%s191 + $0xc] sm:$0xff]
        %v293 = vld [vmem:[%s191 + $0x14] sm:$0xf]
        %v294 = vld [vmem:[%s191 + $0x18] sm:$0xff]
        %v295 = vld [vmem:[%s191 + $0x20] sm:$0xf]
        %v296 = vld [vmem:[%s191 + $0x24] sm:$0xff]
        %v297 = vld [vmem:[%s191 + $0x2c] sm:$0xf]
        %v298 = vld [vmem:[%s191 + $0x30] sm:$0xff]
        %v299 = vld [vmem:[%s191 + $0x38] sm:$0xf]
        %v300 = vld [vmem:[%s191 + $0x3c] sm:$0xff]
        %v301 = vld [vmem:[%s191 + $0x44] sm:$0xf]
        %v302 = vld [vmem:[%s191 + $0x48] sm:$0xff]
        %v303 = vld [vmem:[%s191 + $0x50] sm:$0xf]
        %v304 = vld [vmem:[%s191 + $0x54] sm:$0xff]
        %v305 = vld [vmem:[%s191 + $0x5c] sm:$0xf]
        %v306 = vld [vmem:[%s191 + $0x60] sm:$0xff]
        %v307 = vld [vmem:[%s191 + $0x68] sm:$0xf]
        %v308 = vld [vmem:[%s191 + $0x6c] sm:$0xff]
        %v309 = vld [vmem:[%s191 + $0x74] sm:$0xf]
        %v310 = vld [vmem:[%s191 + $0x78] sm:$0xff]
        %v311 = vld [vmem:[%s191 + $0x80] sm:$0xf]
        %v312 = vld [vmem:[%s191 + $0x84] sm:$0xff]
        %v313 = vld [vmem:[%s191 + $0x8c] sm:$0xf]
        %v314 = vld [vmem:[%s191 + $0x90] sm:$0xff]
        %v315 = vld [vmem:[%s191 + $0x98] sm:$0xf]
        %v316 = vld [vmem:[%s191 + $0x9c] sm:$0xff]
        %v317 = vld [vmem:[%s191 + $0xa4] sm:$0xf]
        %v318 = vld [vmem:[%s191 + $0xa8] sm:$0xff]
        %v319 = vld [vmem:[%s191 + $0xb0] sm:$0xf]
        %v320 = vld [vmem:[%s191 + $0xb4] sm:$0xff]
        %v321 = vld [vmem:[%s191 + $0xbc] sm:$0xf]
        %v322 = vld [vmem:[%s191 + $0xc0] sm:$0xff]
        %v323 = vld [vmem:[%s191 + $0xc8] sm:$0xf]
        %v324 = vld [vmem:[%s191 + $0xcc] sm:$0xff]
        %v325 = vld [vmem:[%s191 + $0xd4] sm:$0xf]
        %v326 = vld [vmem:[%s191 + $0xd8] sm:$0xff]
        %v327 = vld [vmem:[%s191 + $0xe0] sm:$0xf]
        %v328 = vld [vmem:[%s191 + $0xe4] sm:$0xff]
        %v329 = vld [vmem:[%s191 + $0xec] sm:$0xf]
        %v330 = vld [vmem:[%s191 + $0xf0] sm:$0xff]
        %v331 = vld [vmem:[%s191 + $0xf8] sm:$0xf]
        %v332 = vld [vmem:[%s191 + $0xfc] sm:$0xff]
        %v333 = vld [vmem:[%s191 + $0x104] sm:$0xf]
        %v334 = vld [vmem:[%s191 + $0x108] sm:$0xff]
        %v335 = vld [vmem:[%s191 + $0x110] sm:$0xf]
        %v336 = vld [vmem:[%s191 + $0x114] sm:$0xff]
        %v337 = vld [vmem:[%s191 + $0x11c] sm:$0xf]
        %v338 = vld [vmem:[%s191 + $0x120] sm:$0xff]
        %v339 = vld [vmem:[%s191 + $0x128] sm:$0xf]
        %v340 = vld [vmem:[%s191 + $0x12c] sm:$0xff]
        %v341 = vld [vmem:[%s191 + $0x134] sm:$0xf]
        %v342 = vld [vmem:[%s191 + $0x138] sm:$0xff]
        %v343 = vld [vmem:[%s191 + $0x140] sm:$0xf]
        %v344 = vld [vmem:[%s191 + $0x144] sm:$0xff]
        %v345 = vld [vmem:[%s191 + $0x14c] sm:$0xf]
        %v346 = vld [vmem:[%s191 + $0x150] sm:$0xff]
        %v347 = vld [vmem:[%s191 + $0x158] sm:$0xf]
        %v348 = vld [vmem:[%s191 + $0x15c] sm:$0xff]
        %v349 = vld [vmem:[%s191 + $0x164] sm:$0xf]
        %v350 = vld [vmem:[%s191 + $0x168] sm:$0xff]
        %v351 = vld [vmem:[%s191 + $0x170] sm:$0xf]
        %v352 = vld [vmem:[%s191 + $0x174] sm:$0xff]
        %v353 = vld [vmem:[%s191 + $0x17c] sm:$0xf]
        %v354 = vld [vmem:[#allocation6] sm:$0xf]
        %v355 = vld [vmem:[#allocation6 + $0x4] sm:$0xf]
        %v356 = vld [vmem:[#allocation6 + $0x8] sm:$0xf]
        %v357 = vld [vmem:[#allocation6 + $0xc] sm:$0xf]
        %v358 = vld [vmem:[#allocation6 + $0x10] sm:$0xf]
        %v359 = vld [vmem:[#allocation6 + $0x14] sm:$0xf]
        %v360 = vld [vmem:[#allocation6 + $0x18] sm:$0xf]
        %v361 = vld [vmem:[#allocation6 + $0x1c] sm:$0xf]
        %v362 = vld [vmem:[#allocation6 + $0x20] sm:$0xf]
        %v363 = vld [vmem:[#allocation6 + $0x24] sm:$0xf]
        %v364 = vld [vmem:[#allocation6 + $0x28] sm:$0xf]
        %v365 = vld [vmem:[#allocation6 + $0x2c] sm:$0xf]
        %v366 = vld [vmem:[#allocation6 + $0x30] sm:$0xf]
        %v367 = vld [vmem:[#allocation6 + $0x34] sm:$0xf]
        %v368 = vld [vmem:[#allocation6 + $0x38] sm:$0xf]
        %v369 = vld [vmem:[#allocation6 + $0x3c] sm:$0xf]
        %v370 = vld [vmem:[#allocation6 + $0x40] sm:$0xf]
        %v371 = vld [vmem:[#allocation6 + $0x44] sm:$0xf]
        %v372 = vld [vmem:[#allocation6 + $0x48] sm:$0xf]
        %v373 = vld [vmem:[#allocation6 + $0x4c] sm:$0xf]
        %v374 = vld [vmem:[#allocation6 + $0x50] sm:$0xf]
        %v375 = vld [vmem:[#allocation6 + $0x54] sm:$0xf]
        %v376 = vld [vmem:[#allocation6 + $0x58] sm:$0xf]
        %v377 = vld [vmem:[#allocation6 + $0x5c] sm:$0xf]
        %v378 = vld [vmem:[#allocation6 + $0x60] sm:$0xf]
        %v379 = vld [vmem:[#allocation6 + $0x64] sm:$0xf]
        %v380 = vld [vmem:[#allocation6 + $0x68] sm:$0xf]
        %v381 = vld [vmem:[#allocation6 + $0x6c] sm:$0xf]
        %v382 = vld [vmem:[#allocation6 + $0x70] sm:$0xf]
        %v383 = vld [vmem:[#allocation6 + $0x74] sm:$0xf]
        %v384 = vld [vmem:[#allocation6 + $0x78] sm:$0xf]
        %v385 = vld [vmem:[#allocation6 + $0x7c] sm:$0xf]
        %v386 = vld [vmem:[#allocation6 + $0x80] sm:$0xf]
        %v387 = vld [vmem:[#allocation6 + $0x84] sm:$0xf]
        %v388 = vld [vmem:[#allocation6 + $0x88] sm:$0xf]
        %v389 = vld [vmem:[#allocation6 + $0x8c] sm:$0xf]
        %v390 = vld [vmem:[#allocation6 + $0x90] sm:$0xf]
        %v391 = vld [vmem:[#allocation6 + $0x94] sm:$0xf]
        %v392 = vld [vmem:[#allocation6 + $0x98] sm:$0xf]
        %v393 = vld [vmem:[#allocation6 + $0x9c] sm:$0xf]
        %v394 = vld [vmem:[#allocation6 + $0xa0] sm:$0xf]
        %v395 = vld [vmem:[#allocation6 + $0xa4] sm:$0xf]
        %v396 = vld [vmem:[#allocation6 + $0xa8] sm:$0xf]
        %v397 = vld [vmem:[#allocation6 + $0xac] sm:$0xf]
        %v398 = vld [vmem:[#allocation6 + $0xb0] sm:$0xf]
        %v399 = vld [vmem:[#allocation6 + $0xb4] sm:$0xf]
        %v400 = vld [vmem:[#allocation6 + $0xb8] sm:$0xf]
        %v401 = vld [vmem:[#allocation6 + $0xbc] sm:$0xf]
        %v466 = vunpack.c.l.b16 %v290
        %v467 = vunpack.c.h.b16 %v290
        %v468 = vunpack.c.l.b16 %v291
        %v469 = vunpack.c.l.b16 %v292
        %v470 = vunpack.c.h.b16 %v292
        %v471 = vunpack.c.l.b16 %v293
        %v472 = vunpack.c.l.b16 %v294
        %v473 = vunpack.c.h.b16 %v294
        %v474 = vunpack.c.l.b16 %v295
        %v475 = vunpack.c.l.b16 %v296
        %v476 = vunpack.c.h.b16 %v296
        %v477 = vunpack.c.l.b16 %v297
        %v478 = vunpack.c.l.b16 %v298
        %v479 = vunpack.c.h.b16 %v298
        %v480 = vunpack.c.l.b16 %v299
        %v481 = vunpack.c.l.b16 %v300
        %v482 = vunpack.c.h.b16 %v300
        %v483 = vunpack.c.l.b16 %v301
        %v484 = vunpack.c.l.b16 %v302
        %v485 = vunpack.c.h.b16 %v302
        %v486 = vunpack.c.l.b16 %v303
        %v487 = vunpack.c.l.b16 %v304
        %v488 = vunpack.c.h.b16 %v304
        %v489 = vunpack.c.l.b16 %v305
        %v490 = vunpack.c.l.b16 %v306
        %v491 = vunpack.c.h.b16 %v306
        %v492 = vunpack.c.l.b16 %v307
        %v493 = vunpack.c.l.b16 %v308
        %v494 = vunpack.c.h.b16 %v308
        %v495 = vunpack.c.l.b16 %v309
        %v496 = vunpack.c.l.b16 %v310
        %v497 = vunpack.c.h.b16 %v310
        %v498 = vunpack.c.l.b16 %v311
        %v499 = vunpack.c.l.b16 %v312
        %v500 = vunpack.c.h.b16 %v312
        %v501 = vunpack.c.l.b16 %v313
        %v502 = vunpack.c.l.b16 %v314
        %v503 = vunpack.c.h.b16 %v314
        %v504 = vunpack.c.l.b16 %v315
        %v505 = vunpack.c.l.b16 %v316
        %v506 = vunpack.c.h.b16 %v316
        %v507 = vunpack.c.l.b16 %v317
        %v508 = vunpack.c.l.b16 %v318
        %v509 = vunpack.c.h.b16 %v318
        %v510 = vunpack.c.l.b16 %v319
        %v511 = vunpack.c.l.b16 %v320
        %v512 = vunpack.c.h.b16 %v320
        %v513 = vunpack.c.l.b16 %v321
        %v514 = vunpack.c.l.b16 %v322
        %v515 = vunpack.c.h.b16 %v322
        %v516 = vunpack.c.l.b16 %v323
        %v517 = vunpack.c.l.b16 %v324
        %v518 = vunpack.c.h.b16 %v324
        %v519 = vunpack.c.l.b16 %v325
        %v520 = vunpack.c.l.b16 %v326
        %v521 = vunpack.c.h.b16 %v326
        %v522 = vunpack.c.l.b16 %v327
        %v523 = vunpack.c.l.b16 %v328
        %v524 = vunpack.c.h.b16 %v328
        %v525 = vunpack.c.l.b16 %v329
        %v526 = vunpack.c.l.b16 %v330
        %v527 = vunpack.c.h.b16 %v330
        %v528 = vunpack.c.l.b16 %v331
        %v529 = vunpack.c.l.b16 %v332
        %v530 = vunpack.c.h.b16 %v332
        %v531 = vunpack.c.l.b16 %v333
        %v532 = vunpack.c.l.b16 %v334
        %v533 = vunpack.c.h.b16 %v334
        %v534 = vunpack.c.l.b16 %v335
        %v535 = vunpack.c.l.b16 %v336
        %v536 = vunpack.c.h.b16 %v336
        %v537 = vunpack.c.l.b16 %v337
        %v538 = vunpack.c.l.b16 %v338
        %v539 = vunpack.c.h.b16 %v338
        %v540 = vunpack.c.l.b16 %v339
        %v541 = vunpack.c.l.b16 %v340
        %v542 = vunpack.c.h.b16 %v340
        %v543 = vunpack.c.l.b16 %v341
        %v544 = vunpack.c.l.b16 %v342
        %v545 = vunpack.c.h.b16 %v342
        %v546 = vunpack.c.l.b16 %v343
        %v547 = vunpack.c.l.b16 %v344
        %v548 = vunpack.c.h.b16 %v344
        %v549 = vunpack.c.l.b16 %v345
        %v550 = vunpack.c.l.b16 %v346
        %v551 = vunpack.c.h.b16 %v346
        %v552 = vunpack.c.l.b16 %v347
        %v553 = vunpack.c.l.b16 %v348
        %v554 = vunpack.c.h.b16 %v348
        %v555 = vunpack.c.l.b16 %v349
        %v556 = vunpack.c.l.b16 %v350
        %v557 = vunpack.c.h.b16 %v350
        %v558 = vunpack.c.l.b16 %v351
        %v559 = vunpack.c.l.b16 %v352
        %v560 = vunpack.c.h.b16 %v352
        %v561 = vunpack.c.l.b16 %v353
        %v562 = vpack.c.b16 %v469, %v466
        %v563 = vpack.c.b16 %v470, %v467
        %v564 = vpack.c.b16 %v471, %v468
        %v565 = vpack.c.b16 %v475, %v472
        %v566 = vpack.c.b16 %v476, %v473
        %v567 = vpack.c.b16 %v477, %v474
        %v568 = vpack.c.b16 %v481, %v478
        %v569 = vpack.c.b16 %v482, %v479
        %v570 = vpack.c.b16 %v483, %v480
        %v571 = vpack.c.b16 %v487, %v484
        %v572 = vpack.c.b16 %v488, %v485
        %v573 = vpack.c.b16 %v489, %v486
        %v574 = vpack.c.b16 %v493, %v490
        %v575 = vpack.c.b16 %v494, %v491
        %v576 = vpack.c.b16 %v495, %v492
        %v577 = vpack.c.b16 %v499, %v496
        %v578 = vpack.c.b16 %v500, %v497
        %v579 = vpack.c.b16 %v501, %v498
        %v580 = vpack.c.b16 %v505, %v502
        %v581 = vpack.c.b16 %v506, %v503
        %v582 = vpack.c.b16 %v507, %v504
        %v583 = vpack.c.b16 %v511, %v508
        %v584 = vpack.c.b16 %v512, %v509
        %v585 = vpack.c.b16 %v513, %v510
        %v586 = vpack.c.b16 %v517, %v514
        %v587 = vpack.c.b16 %v518, %v515
        %v588 = vpack.c.b16 %v519, %v516
        %v589 = vpack.c.b16 %v523, %v520
        %v590 = vpack.c.b16 %v524, %v521
        %v591 = vpack.c.b16 %v525, %v522
        %v592 = vpack.c.b16 %v529, %v526
        %v593 = vpack.c.b16 %v530, %v527
        %v594 = vpack.c.b16 %v531, %v528
        %v595 = vpack.c.b16 %v535, %v532
        %v596 = vpack.c.b16 %v536, %v533
        %v597 = vpack.c.b16 %v537, %v534
        %v598 = vpack.c.b16 %v541, %v538
        %v599 = vpack.c.b16 %v542, %v539
        %v600 = vpack.c.b16 %v543, %v540
        %v601 = vpack.c.b16 %v547, %v544
        %v602 = vpack.c.b16 %v548, %v545
        %v603 = vpack.c.b16 %v549, %v546
        %v604 = vpack.c.b16 %v553, %v550
        %v605 = vpack.c.b16 %v554, %v551
        %v606 = vpack.c.b16 %v555, %v552
        %v607 = vpack.c.b16 %v559, %v556
        %v608 = vpack.c.b16 %v560, %v557
        %v609 = vpack.c.b16 %v561, %v558
        %v706 = vunpack.c.l.b16 %v354
        %v707 = vunpack.c.l.b16 %v355
        %v708 = vunpack.c.l.b16 %v356
        %v709 = vunpack.c.l.b16 %v357
        %v710 = vunpack.c.l.b16 %v358
        %v711 = vunpack.c.l.b16 %v359
        %v712 = vunpack.c.l.b16 %v360
        %v713 = vunpack.c.l.b16 %v361
        %v714 = vunpack.c.l.b16 %v362
        %v715 = vunpack.c.l.b16 %v363
        %v716 = vunpack.c.l.b16 %v364
        %v717 = vunpack.c.l.b16 %v365
        %v718 = vunpack.c.l.b16 %v366
        %v719 = vunpack.c.l.b16 %v367
        %v720 = vunpack.c.l.b16 %v368
        %v721 = vunpack.c.l.b16 %v369
        %v722 = vunpack.c.l.b16 %v370
        %v723 = vunpack.c.l.b16 %v371
        %v724 = vunpack.c.l.b16 %v372
        %v725 = vunpack.c.l.b16 %v373
        %v726 = vunpack.c.l.b16 %v374
        %v727 = vunpack.c.l.b16 %v375
        %v728 = vunpack.c.l.b16 %v376
        %v729 = vunpack.c.l.b16 %v377
        %v730 = vunpack.c.l.b16 %v378
        %v731 = vunpack.c.l.b16 %v379
        %v732 = vunpack.c.l.b16 %v380
        %v733 = vunpack.c.l.b16 %v381
        %v734 = vunpack.c.l.b16 %v382
        %v735 = vunpack.c.l.b16 %v383
        %v736 = vunpack.c.l.b16 %v384
        %v737 = vunpack.c.l.b16 %v385
        %v738 = vunpack.c.l.b16 %v386
        %v739 = vunpack.c.l.b16 %v387
        %v740 = vunpack.c.l.b16 %v388
        %v741 = vunpack.c.l.b16 %v389
        %v742 = vunpack.c.l.b16 %v390
        %v743 = vunpack.c.l.b16 %v391
        %v744 = vunpack.c.l.b16 %v392
        %v745 = vunpack.c.l.b16 %v393
        %v746 = vunpack.c.l.b16 %v394
        %v747 = vunpack.c.l.b16 %v395
        %v748 = vunpack.c.l.b16 %v396
        %v749 = vunpack.c.l.b16 %v397
        %v750 = vunpack.c.l.b16 %v398
        %v751 = vunpack.c.l.b16 %v399
        %v752 = vunpack.c.l.b16 %v400
        %v753 = vunpack.c.l.b16 %v401
        %v754 = vpack.c.b16 %v707, %v706
        %v755 = vpack.c.b16 %v709, %v708
        %v756 = vpack.c.b16 %v711, %v710
        %v757 = vpack.c.b16 %v713, %v712
        %v758 = vpack.c.b16 %v715, %v714
        %v759 = vpack.c.b16 %v717, %v716
        %v760 = vpack.c.b16 %v719, %v718
        %v761 = vpack.c.b16 %v721, %v720
        %v762 = vpack.c.b16 %v723, %v722
        %v763 = vpack.c.b16 %v725, %v724
        %v764 = vpack.c.b16 %v727, %v726
        %v765 = vpack.c.b16 %v729, %v728
        %v766 = vpack.c.b16 %v731, %v730
        %v767 = vpack.c.b16 %v733, %v732
        %v768 = vpack.c.b16 %v735, %v734
        %v769 = vpack.c.b16 %v737, %v736
        %v770 = vpack.c.b16 %v739, %v738
        %v771 = vpack.c.b16 %v741, %v740
        %v772 = vpack.c.b16 %v743, %v742
        %v773 = vpack.c.b16 %v745, %v744
        %v774 = vpack.c.b16 %v747, %v746
        %v775 = vpack.c.b16 %v749, %v748
        %v776 = vpack.c.b16 %v751, %v750
        %v777 = vpack.c.b16 %v753, %v752
        %802 = vmatpush.bf16.msra.mxu0 %v761
        %803 = vmatpush.bf16.msra.mxu0 %v760
        %804 = vmatpush.bf16.msra.mxu0 %v759
        %805 = vmatpush.bf16.msra.mxu0 %v758
        %806 = vmatpush.bf16.msra.mxu0 %v757
        %807 = vmatpush.bf16.msra.mxu0 %v756
        %808 = vmatpush.bf16.msra.mxu0 %v755
        %809 = vmatpush.bf16.msra.mxu0 %v754
        %810 = vmatmul.bf16.gmra.mxu0 %v562
        %v811 = vpop.f32.mrf.mxu0
        %v812 = vadd.f32 0.0, %v811
        %v813 = vpop.f32.mrf.mxu0
        %v814 = vadd.f32 0.0, %v813
        %815 = vmatmul.bf16.gmra.mxu0 %v565
        %v816 = vpop.f32.mrf.mxu0
        %v817 = vadd.f32 0.0, %v816
        %v818 = vpop.f32.mrf.mxu0
        %v819 = vadd.f32 0.0, %v818
        %820 = vmatmul.bf16.gmra.mxu0 %v568
        %v821 = vpop.f32.mrf.mxu0
        %v822 = vadd.f32 0.0, %v821
        %v823 = vpop.f32.mrf.mxu0
        %v824 = vadd.f32 0.0, %v823
        %825 = vmatmul.bf16.gmra.mxu0 %v571
        %v826 = vpop.f32.mrf.mxu0
        %v827 = vadd.f32 0.0, %v826
        %v828 = vpop.f32.mrf.mxu0
        %v829 = vadd.f32 0.0, %v828
        %830 = vmatmul.bf16.gmra.mxu0 %v574
        %v831 = vpop.f32.mrf.mxu0
        %v832 = vadd.f32 0.0, %v831
        %v833 = vpop.f32.mrf.mxu0
        %v834 = vadd.f32 0.0, %v833
        %835 = vmatmul.bf16.gmra.mxu0 %v577
        %v836 = vpop.f32.mrf.mxu0
        %v837 = vadd.f32 0.0, %v836
        %v838 = vpop.f32.mrf.mxu0
        %v839 = vadd.f32 0.0, %v838
        %840 = vmatmul.bf16.gmra.mxu0 %v580
        %v841 = vpop.f32.mrf.mxu0
        %v842 = vadd.f32 0.0, %v841
        %v843 = vpop.f32.mrf.mxu0
        %v844 = vadd.f32 0.0, %v843
        %845 = vmatmul.bf16.gmra.mxu0 %v583
        %v846 = vpop.f32.mrf.mxu0
        %v847 = vadd.f32 0.0, %v846
        %v848 = vpop.f32.mrf.mxu0
        %v849 = vadd.f32 0.0, %v848
        %850 = vmatmul.bf16.gmra.mxu0 %v586
        %v851 = vpop.f32.mrf.mxu0
        %v852 = vadd.f32 0.0, %v851
        %v853 = vpop.f32.mrf.mxu0
        %v854 = vadd.f32 0.0, %v853
        %855 = vmatmul.bf16.gmra.mxu0 %v589
        %v856 = vpop.f32.mrf.mxu0
        %v857 = vadd.f32 0.0, %v856
        %v858 = vpop.f32.mrf.mxu0
        %v859 = vadd.f32 0.0, %v858
        %860 = vmatmul.bf16.gmra.mxu0 %v592
        %v861 = vpop.f32.mrf.mxu0
        %v862 = vadd.f32 0.0, %v861
        %v863 = vpop.f32.mrf.mxu0
        %v864 = vadd.f32 0.0, %v863
        %865 = vmatmul.bf16.gmra.mxu0 %v595
        %v866 = vpop.f32.mrf.mxu0
        %v867 = vadd.f32 0.0, %v866
        %v868 = vpop.f32.mrf.mxu0
        %v869 = vadd.f32 0.0, %v868
        %870 = vmatmul.bf16.gmra.mxu0 %v598
        %v871 = vpop.f32.mrf.mxu0
        %v872 = vadd.f32 0.0, %v871
        %v873 = vpop.f32.mrf.mxu0
        %v874 = vadd.f32 0.0, %v873
        %875 = vmatmul.bf16.gmra.mxu0 %v601
        %v876 = vpop.f32.mrf.mxu0
        %v877 = vadd.f32 0.0, %v876
        %v878 = vpop.f32.mrf.mxu0
        %v879 = vadd.f32 0.0, %v878
        %880 = vmatmul.bf16.gmra.mxu0 %v604
        %v881 = vpop.f32.mrf.mxu0
        %v882 = vadd.f32 0.0, %v881
        %v883 = vpop.f32.mrf.mxu0
        %v884 = vadd.f32 0.0, %v883
        %885 = vmatmul.bf16.gmra.mxu0 %v607
        %v886 = vpop.f32.mrf.mxu0
        %v887 = vadd.f32 0.0, %v886
        %v888 = vpop.f32.mrf.mxu0
        %v889 = vadd.f32 0.0, %v888
        %890 = vdwg.mxu0
        %891 = vmatpush.bf16.msra.mxu0 %v769
        %892 = vmatpush.bf16.msra.mxu0 %v768
        %893 = vmatpush.bf16.msra.mxu0 %v767
        %894 = vmatpush.bf16.msra.mxu0 %v766
        %895 = vmatpush.bf16.msra.mxu0 %v765
        %896 = vmatpush.bf16.msra.mxu0 %v764
        %897 = vmatpush.bf16.msra.mxu0 %v763
        %898 = vmatpush.bf16.msra.mxu0 %v762
        %899 = vmatmul.bf16.gmra.mxu0 %v563
        %v900 = vpop.f32.mrf.mxu0
        %v901 = vadd.f32 %v812, %v900
        %v902 = vpop.f32.mrf.mxu0
        %v903 = vadd.f32 %v814, %v902
        %904 = vmatmul.bf16.gmra.mxu0 %v566
        %v905 = vpop.f32.mrf.mxu0
        %v906 = vadd.f32 %v817, %v905
        %v907 = vpop.f32.mrf.mxu0
        %v908 = vadd.f32 %v819, %v907
        %909 = vmatmul.bf16.gmra.mxu0 %v569
        %v910 = vpop.f32.mrf.mxu0
        %v911 = vadd.f32 %v822, %v910
        %v912 = vpop.f32.mrf.mxu0
        %v913 = vadd.f32 %v824, %v912
        %914 = vmatmul.bf16.gmra.mxu0 %v572
        %v915 = vpop.f32.mrf.mxu0
        %v916 = vadd.f32 %v827, %v915
        %v917 = vpop.f32.mrf.mxu0
        %v918 = vadd.f32 %v829, %v917
        %919 = vmatmul.bf16.gmra.mxu0 %v575
        %v920 = vpop.f32.mrf.mxu0
        %v921 = vadd.f32 %v832, %v920
        %v922 = vpop.f32.mrf.mxu0
        %v923 = vadd.f32 %v834, %v922
        %924 = vmatmul.bf16.gmra.mxu0 %v578
        %v925 = vpop.f32.mrf.mxu0
        %v926 = vadd.f32 %v837, %v925
        %v927 = vpop.f32.mrf.mxu0
        %v928 = vadd.f32 %v839, %v927
        %929 = vmatmul.bf16.gmra.mxu0 %v581
        %v930 = vpop.f32.mrf.mxu0
        %v931 = vadd.f32 %v842, %v930
        %v932 = vpop.f32.mrf.mxu0
        %v933 = vadd.f32 %v844, %v932
        %934 = vmatmul.bf16.gmra.mxu0 %v584
        %v935 = vpop.f32.mrf.mxu0
        %v936 = vadd.f32 %v847, %v935
        %v937 = vpop.f32.mrf.mxu0
        %v938 = vadd.f32 %v849, %v937
        %939 = vmatmul.bf16.gmra.mxu0 %v587
        %v940 = vpop.f32.mrf.mxu0
        %v941 = vadd.f32 %v852, %v940
        %v942 = vpop.f32.mrf.mxu0
        %v943 = vadd.f32 %v854, %v942
        %944 = vmatmul.bf16.gmra.mxu0 %v590
        %v945 = vpop.f32.mrf.mxu0
        %v946 = vadd.f32 %v857, %v945
        %v947 = vpop.f32.mrf.mxu0
        %v948 = vadd.f32 %v859, %v947
        %949 = vmatmul.bf16.gmra.mxu0 %v593
        %v950 = vpop.f32.mrf.mxu0
        %v951 = vadd.f32 %v862, %v950
        %v952 = vpop.f32.mrf.mxu0
        %v953 = vadd.f32 %v864, %v952
        %954 = vmatmul.bf16.gmra.mxu0 %v596
        %v955 = vpop.f32.mrf.mxu0
        %v956 = vadd.f32 %v867, %v955
        %v957 = vpop.f32.mrf.mxu0
        %v958 = vadd.f32 %v869, %v957
        %959 = vmatmul.bf16.gmra.mxu0 %v599
        %v960 = vpop.f32.mrf.mxu0
        %v961 = vadd.f32 %v872, %v960
        %v962 = vpop.f32.mrf.mxu0
        %v963 = vadd.f32 %v874, %v962
        %964 = vmatmul.bf16.gmra.mxu0 %v602
        %v965 = vpop.f32.mrf.mxu0
        %v966 = vadd.f32 %v877, %v965
        %v967 = vpop.f32.mrf.mxu0
        %v968 = vadd.f32 %v879, %v967
        %969 = vmatmul.bf16.gmra.mxu0 %v605
        %v970 = vpop.f32.mrf.mxu0
        %v971 = vadd.f32 %v882, %v970
        %v972 = vpop.f32.mrf.mxu0
        %v973 = vadd.f32 %v884, %v972
        %974 = vmatmul.bf16.gmra.mxu0 %v608
        %v975 = vpop.f32.mrf.mxu0
        %v976 = vadd.f32 %v887, %v975
        %v977 = vpop.f32.mrf.mxu0
        %v978 = vadd.f32 %v889, %v977
        %979 = vdwg.mxu0
        %980 = vmatpush.bf16.msra.mxu0 %v777
        %981 = vmatpush.bf16.msra.mxu0 %v776
        %982 = vmatpush.bf16.msra.mxu0 %v775
        %983 = vmatpush.bf16.msra.mxu0 %v774
        %984 = vmatpush.bf16.msra.mxu0 %v773
        %985 = vmatpush.bf16.msra.mxu0 %v772
        %986 = vmatpush.bf16.msra.mxu0 %v771
        %987 = vmatpush.bf16.msra.mxu0 %v770
        %988 = vmatmul.bf16.gmra.mxu0 %v564
        %v989 = vpop.f32.mrf.mxu0
        %v990 = vadd.f32 %v901, %v989
        %v991 = vpop.f32.mrf.mxu0
        %v992 = vadd.f32 %v903, %v991
        %993 = vmatmul.bf16.gmra.mxu0 %v567
        %v994 = vpop.f32.mrf.mxu0
        %v995 = vadd.f32 %v906, %v994
        %v996 = vpop.f32.mrf.mxu0
        %v997 = vadd.f32 %v908, %v996
        %998 = vmatmul.bf16.gmra.mxu0 %v570
        %v999 = vpop.f32.mrf.mxu0
        %v1000 = vadd.f32 %v911, %v999
        %v1001 = vpop.f32.mrf.mxu0
        %v1002 = vadd.f32 %v913, %v1001
        %1003 = vmatmul.bf16.gmra.mxu0 %v573
        %v1004 = vpop.f32.mrf.mxu0
        %v1005 = vadd.f32 %v916, %v1004
        %v1006 = vpop.f32.mrf.mxu0
        %v1007 = vadd.f32 %v918, %v1006
        %1008 = vmatmul.bf16.gmra.mxu0 %v576
        %v1009 = vpop.f32.mrf.mxu0
        %v1010 = vadd.f32 %v921, %v1009
        %v1011 = vpop.f32.mrf.mxu0
        %v1012 = vadd.f32 %v923, %v1011
        %1013 = vmatmul.bf16.gmra.mxu0 %v579
        %v1014 = vpop.f32.mrf.mxu0
        %v1015 = vadd.f32 %v926, %v1014
        %v1016 = vpop.f32.mrf.mxu0
        %v1017 = vadd.f32 %v928, %v1016
        %1018 = vmatmul.bf16.gmra.mxu0 %v582
        %v1019 = vpop.f32.mrf.mxu0
        %v1020 = vadd.f32 %v931, %v1019
        %v1021 = vpop.f32.mrf.mxu0
        %v1022 = vadd.f32 %v933, %v1021
        %1023 = vmatmul.bf16.gmra.mxu0 %v585
        %v1024 = vpop.f32.mrf.mxu0
        %v1025 = vadd.f32 %v936, %v1024
        %v1026 = vpop.f32.mrf.mxu0
        %v1027 = vadd.f32 %v938, %v1026
        %1028 = vmatmul.bf16.gmra.mxu0 %v588
        %v1029 = vpop.f32.mrf.mxu0
        %v1030 = vadd.f32 %v941, %v1029
        %v1031 = vpop.f32.mrf.mxu0
        %v1032 = vadd.f32 %v943, %v1031
        %1033 = vmatmul.bf16.gmra.mxu0 %v591
        %v1034 = vpop.f32.mrf.mxu0
        %v1035 = vadd.f32 %v946, %v1034
        %v1036 = vpop.f32.mrf.mxu0
        %v1037 = vadd.f32 %v948, %v1036
        %1038 = vmatmul.bf16.gmra.mxu0 %v594
        %v1039 = vpop.f32.mrf.mxu0
        %v1040 = vadd.f32 %v951, %v1039
        %v1041 = vpop.f32.mrf.mxu0
        %v1042 = vadd.f32 %v953, %v1041
        %1043 = vmatmul.bf16.gmra.mxu0 %v597
        %v1044 = vpop.f32.mrf.mxu0
        %v1045 = vadd.f32 %v956, %v1044
        %v1046 = vpop.f32.mrf.mxu0
        %v1047 = vadd.f32 %v958, %v1046
        %1048 = vmatmul.bf16.gmra.mxu0 %v600
        %v1049 = vpop.f32.mrf.mxu0
        %v1050 = vadd.f32 %v961, %v1049
        %v1051 = vpop.f32.mrf.mxu0
        %v1052 = vadd.f32 %v963, %v1051
        %1053 = vmatmul.bf16.gmra.mxu0 %v603
        %v1054 = vpop.f32.mrf.mxu0
        %v1055 = vadd.f32 %v966, %v1054
        %v1056 = vpop.f32.mrf.mxu0
        %v1057 = vadd.f32 %v968, %v1056
        %1058 = vmatmul.bf16.gmra.mxu0 %v606
        %v1059 = vpop.f32.mrf.mxu0
        %v1060 = vadd.f32 %v971, %v1059
        %v1061 = vpop.f32.mrf.mxu0
        %v1062 = vadd.f32 %v973, %v1061
        %1063 = vmatmul.bf16.gmra.mxu0 %v609
        %v1064 = vpop.f32.mrf.mxu0
        %v1065 = vadd.f32 %v976, %v1064
        %v1066 = vpop.f32.mrf.mxu0
        %v1067 = vadd.f32 %v978, %v1066
        %1068 = vdwg.mxu0
        %v1069 = vadd.f32 %v258, %v990
        %v1070 = vadd.f32 %v259, %v992
        %v1071 = vadd.f32 %v260, %v995
        %v1072 = vadd.f32 %v261, %v997
        %v1073 = vadd.f32 %v262, %v1000
        %v1074 = vadd.f32 %v263, %v1002
        %v1075 = vadd.f32 %v264, %v1005
        %v1076 = vadd.f32 %v265, %v1007
        %v1077 = vadd.f32 %v266, %v1010
        %v1078 = vadd.f32 %v267, %v1012
        %v1079 = vadd.f32 %v268, %v1015
        %v1080 = vadd.f32 %v269, %v1017
        %v1081 = vadd.f32 %v270, %v1020
        %v1082 = vadd.f32 %v271, %v1022
        %v1083 = vadd.f32 %v272, %v1025
        %v1084 = vadd.f32 %v273, %v1027
        %v1085 = vadd.f32 %v274, %v1030
        %v1086 = vadd.f32 %v275, %v1032
        %v1087 = vadd.f32 %v276, %v1035
        %v1088 = vadd.f32 %v277, %v1037
        %v1089 = vadd.f32 %v278, %v1040
        %v1090 = vadd.f32 %v279, %v1042
        %v1091 = vadd.f32 %v280, %v1045
        %v1092 = vadd.f32 %v281, %v1047
        %v1093 = vadd.f32 %v282, %v1050
        %v1094 = vadd.f32 %v283, %v1052
        %v1095 = vadd.f32 %v284, %v1055
        %v1096 = vadd.f32 %v285, %v1057
        %v1097 = vadd.f32 %v286, %v1060
        %v1098 = vadd.f32 %v287, %v1062
        %v1099 = vadd.f32 %v288, %v1065
        %v1100 = vadd.f32 %v289, %v1067
        %1101 = vst [vmem:[#allocation2] sm:$0xff] %v1069
        %1102 = vst [vmem:[#allocation2 + $0x8] sm:$0xff] %v1070
        %1103 = vst [vmem:[#allocation2 + $0x10] sm:$0xff] %v1071
        %1104 = vst [vmem:[#allocation2 + $0x18] sm:$0xff] %v1072
        %1105 = vst [vmem:[#allocation2 + $0x20] sm:$0xff] %v1073
        %1106 = vst [vmem:[#allocation2 + $0x28] sm:$0xff] %v1074
        %1107 = vst [vmem:[#allocation2 + $0x30] sm:$0xff] %v1075
        %1108 = vst [vmem:[#allocation2 + $0x38] sm:$0xff] %v1076
        %1109 = vst [vmem:[#allocation2 + $0x40] sm:$0xff] %v1077
        %1110 = vst [vmem:[#allocation2 + $0x48] sm:$0xff] %v1078
        %1111 = vst [vmem:[#allocation2 + $0x50] sm:$0xff] %v1079
        %1112 = vst [vmem:[#allocation2 + $0x58] sm:$0xff] %v1080
        %1113 = vst [vmem:[#allocation2 + $0x60] sm:$0xff] %v1081
        %1114 = vst [vmem:[#allocation2 + $0x68] sm:$0xff] %v1082
        %1115 = vst [vmem:[#allocation2 + $0x70] sm:$0xff] %v1083
        %1116 = vst [vmem:[#allocation2 + $0x78] sm:$0xff] %v1084
        %1117 = vst [vmem:[#allocation2 + $0x80] sm:$0xff] %v1085
        %1118 = vst [vmem:[#allocation2 + $0x88] sm:$0xff] %v1086
        %1119 = vst [vmem:[#allocation2 + $0x90] sm:$0xff] %v1087
        %1120 = vst [vmem:[#allocation2 + $0x98] sm:$0xff] %v1088
        %1121 = vst [vmem:[#allocation2 + $0xa0] sm:$0xff] %v1089
        %1122 = vst [vmem:[#allocation2 + $0xa8] sm:$0xff] %v1090
        %1123 = vst [vmem:[#allocation2 + $0xb0] sm:$0xff] %v1091
        %1124 = vst [vmem:[#allocation2 + $0xb8] sm:$0xff] %v1092
        %1125 = vst [vmem:[#allocation2 + $0xc0] sm:$0xff] %v1093
        %1126 = vst [vmem:[#allocation2 + $0xc8] sm:$0xff] %v1094
        %1127 = vst [vmem:[#allocation2 + $0xd0] sm:$0xff] %v1095
        %1128 = vst [vmem:[#allocation2 + $0xd8] sm:$0xff] %v1096
        %1129 = vst [vmem:[#allocation2 + $0xe0] sm:$0xff] %v1097
        %1130 = vst [vmem:[#allocation2 + $0xe8] sm:$0xff] %v1098
        %1131 = vst [vmem:[#allocation2 + $0xf0] sm:$0xff] %v1099
        %1132 = vst [vmem:[#allocation2 + $0xf8] sm:$0xff] %v1100
        // Predicated region
        $region41: #{tpu_custom_call.1} parent=27 // pred_check
          %p1133 = pneg %p222
        $region42: #{tpu_custom_call.1} parent=27 // pred_check_branch
          %1135 = sbr.rel (%p1133) target = $region44
        $region43: #{tpu_custom_call.1} parent=27 // pred_region
          %v1136 = vld [vmem:[#allocation2] sm:$0xff]
          %v1137 = vld [vmem:[#allocation2 + $0x8] sm:$0xff]
          %v1138 = vld [vmem:[#allocation2 + $0x10] sm:$0xff]
          %v1139 = vld [vmem:[#allocation2 + $0x18] sm:$0xff]
          %v1140 = vld [vmem:[#allocation2 + $0x20] sm:$0xff]
          %v1141 = vld [vmem:[#allocation2 + $0x28] sm:$0xff]
          %v1142 = vld [vmem:[#allocation2 + $0x30] sm:$0xff]
          %v1143 = vld [vmem:[#allocation2 + $0x38] sm:$0xff]
          %v1144 = vld [vmem:[#allocation2 + $0x40] sm:$0xff]
          %v1145 = vld [vmem:[#allocation2 + $0x48] sm:$0xff]
          %v1146 = vld [vmem:[#allocation2 + $0x50] sm:$0xff]
          %v1147 = vld [vmem:[#allocation2 + $0x58] sm:$0xff]
          %v1148 = vld [vmem:[#allocation2 + $0x60] sm:$0xff]
          %v1149 = vld [vmem:[#allocation2 + $0x68] sm:$0xff]
          %v1150 = vld [vmem:[#allocation2 + $0x70] sm:$0xff]
          %v1151 = vld [vmem:[#allocation2 + $0x78] sm:$0xff]
          %v1152 = vld [vmem:[#allocation2 + $0x80] sm:$0xff]
          %v1153 = vld [vmem:[#allocation2 + $0x88] sm:$0xff]
          %v1154 = vld [vmem:[#allocation2 + $0x90] sm:$0xff]
          %v1155 = vld [vmem:[#allocation2 + $0x98] sm:$0xff]
          %v1156 = vld [vmem:[#allocation2 + $0xa0] sm:$0xff]
          %v1157 = vld [vmem:[#allocation2 + $0xa8] sm:$0xff]
          %v1158 = vld [vmem:[#allocation2 + $0xb0] sm:$0xff]
          %v1159 = vld [vmem:[#allocation2 + $0xb8] sm:$0xff]
          %v1160 = vld [vmem:[#allocation2 + $0xc0] sm:$0xff]
          %v1161 = vld [vmem:[#allocation2 + $0xc8] sm:$0xff]
          %v1162 = vld [vmem:[#allocation2 + $0xd0] sm:$0xff]
          %v1163 = vld [vmem:[#allocation2 + $0xd8] sm:$0xff]
          %v1164 = vld [vmem:[#allocation2 + $0xe0] sm:$0xff]
          %v1165 = vld [vmem:[#allocation2 + $0xe8] sm:$0xff]
          %v1166 = vld [vmem:[#allocation2 + $0xf0] sm:$0xff]
          %v1167 = vld [vmem:[#allocation2 + $0xf8] sm:$0xff]
          %v1168 = vpack.c.bf16 %v1136, %v1136
          %v1169 = vpack.c.bf16 %v1137, %v1137
          %v1170 = vpack.c.bf16 %v1138, %v1138
          %v1171 = vpack.c.bf16 %v1139, %v1139
          %v1172 = vpack.c.bf16 %v1140, %v1140
          %v1173 = vpack.c.bf16 %v1141, %v1141
          %v1174 = vpack.c.bf16 %v1142, %v1142
          %v1175 = vpack.c.bf16 %v1143, %v1143
          %v1176 = vpack.c.bf16 %v1144, %v1144
          %v1177 = vpack.c.bf16 %v1145, %v1145
          %v1178 = vpack.c.bf16 %v1146, %v1146
          %v1179 = vpack.c.bf16 %v1147, %v1147
          %v1180 = vpack.c.bf16 %v1148, %v1148
          %v1181 = vpack.c.bf16 %v1149, %v1149
          %v1182 = vpack.c.bf16 %v1150, %v1150
          %v1183 = vpack.c.bf16 %v1151, %v1151
          %v1184 = vpack.c.bf16 %v1152, %v1152
          %v1185 = vpack.c.bf16 %v1153, %v1153
          %v1186 = vpack.c.bf16 %v1154, %v1154
          %v1187 = vpack.c.bf16 %v1155, %v1155
          %v1188 = vpack.c.bf16 %v1156, %v1156
          %v1189 = vpack.c.bf16 %v1157, %v1157
          %v1190 = vpack.c.bf16 %v1158, %v1158
          %v1191 = vpack.c.bf16 %v1159, %v1159
          %v1192 = vpack.c.bf16 %v1160, %v1160
          %v1193 = vpack.c.bf16 %v1161, %v1161
          %v1194 = vpack.c.bf16 %v1162, %v1162
          %v1195 = vpack.c.bf16 %v1163, %v1163
          %v1196 = vpack.c.bf16 %v1164, %v1164
          %v1197 = vpack.c.bf16 %v1165, %v1165
          %v1198 = vpack.c.bf16 %v1166, %v1166
          %v1199 = vpack.c.bf16 %v1167, %v1167
          %1200 = vst [vmem:[%s217] sm:$0xf] %v1168
          %1201 = vst [vmem:[%s217 + $0x4] sm:$0xf] %v1169
          %1202 = vst [vmem:[%s217 + $0x8] sm:$0xf] %v1170
          %1203 = vst [vmem:[%s217 + $0xc] sm:$0xf] %v1171
          %1204 = vst [vmem:[%s217 + $0x10] sm:$0xf] %v1172
          %1205 = vst [vmem:[%s217 + $0x14] sm:$0xf] %v1173
          %1206 = vst [vmem:[%s217 + $0x18] sm:$0xf] %v1174
          %1207 = vst [vmem:[%s217 + $0x1c] sm:$0xf] %v1175
          %1208 = vst [vmem:[%s217 + $0x20] sm:$0xf] %v1176
          %1209 = vst [vmem:[%s217 + $0x24] sm:$0xf] %v1177
          %1210 = vst [vmem:[%s217 + $0x28] sm:$0xf] %v1178
          %1211 = vst [vmem:[%s217 + $0x2c] sm:$0xf] %v1179
          %1212 = vst [vmem:[%s217 + $0x30] sm:$0xf] %v1180
          %1213 = vst [vmem:[%s217 + $0x34] sm:$0xf] %v1181
          %1214 = vst [vmem:[%s217 + $0x38] sm:$0xf] %v1182
          %1215 = vst [vmem:[%s217 + $0x3c] sm:$0xf] %v1183
          %1216 = vst [vmem:[%s217 + $0x40] sm:$0xf] %v1184
          %1217 = vst [vmem:[%s217 + $0x44] sm:$0xf] %v1185
          %1218 = vst [vmem:[%s217 + $0x48] sm:$0xf] %v1186
          %1219 = vst [vmem:[%s217 + $0x4c] sm:$0xf] %v1187
          %1220 = vst [vmem:[%s217 + $0x50] sm:$0xf] %v1188
          %1221 = vst [vmem:[%s217 + $0x54] sm:$0xf] %v1189
          %1222 = vst [vmem:[%s217 + $0x58] sm:$0xf] %v1190
          %1223 = vst [vmem:[%s217 + $0x5c] sm:$0xf] %v1191
          %1224 = vst [vmem:[%s217 + $0x60] sm:$0xf] %v1192
          %1225 = vst [vmem:[%s217 + $0x64] sm:$0xf] %v1193
          %1226 = vst [vmem:[%s217 + $0x68] sm:$0xf] %v1194
          %1227 = vst [vmem:[%s217 + $0x6c] sm:$0xf] %v1195
          %1228 = vst [vmem:[%s217 + $0x70] sm:$0xf] %v1196
          %1229 = vst [vmem:[%s217 + $0x74] sm:$0xf] %v1197
          %1230 = vst [vmem:[%s217 + $0x78] sm:$0xf] %v1198
          %1231 = vst [vmem:[%s217 + $0x7c] sm:$0xf] %v1199
        $region44: #{tpu_custom_call.1} parent=27 // pred_fallthru
          _
        %s1232 = sand.u32 %s105, 1
        %s1233 = scalar_lea.sflag [#allocation5], %s1232
        %s1234 = sand.u32 %s105, 1
        %s1235 = smul.addr %s1234, 128
        %s1236 = scalar_lea.vmem [#allocation8], %s1235
        // Predicated region
        $region45: #{tpu_custom_call.1} parent=27 // pred_check
          %p1237 = pneg %p115
        $region46: #{tpu_custom_call.1} parent=27 // pred_check_branch
          %1239 = sbr.rel (%p1237) target = $region48
        $region47: #{tpu_custom_call.1} parent=27 // pred_region
          %s1240 = smul.u32 32, %s25
          %1242 = vsyncadd %s1233, 0
          %s1243 = sadd.s32 %s26, %s1240
          %s1244 = smul.addr %s1243, 4
          %s1245 = scalar_lea.hbm %s2, %s1244
          %s1246 = sshll.u32 %s1236, 4
          %s1247 = int_to_ptr.vmem [resolvable:$true] %s1246
          %s1248 = sshll.u32 %s1245, 4
          %s1249 = int_to_ptr.hbm [resolvable:$true] %s1248
          %1254 = dma.vmem_to_hbm [thread:$0]  %s1247, 2048, %s1249, %s1233, 64, 64, 4
        $region48: #{tpu_custom_call.1} parent=27 // pred_fallthru
          _
      $region28: #{tpu_custom_call.1} parent=5 // pred_fallthru
        _
      %p1255 = scmp.le.s32.totalorder 2, %s15
      // Predicated region
      $region49: #{tpu_custom_call.1} parent=5 // pred_check
        %p1256 = pneg %p1255
      $region50: #{tpu_custom_call.1} parent=5 // pred_check_branch
        %1258 = sbr.rel (%p1256) target = $region52
      $region51: #{tpu_custom_call.1} parent=5 // pred_region
        %s1259 = ssub.s32 %s15, 2
        // Predicated region
        $region53: #{tpu_custom_call.1} parent=51 // pred_check
          %p1260 = pneg %p121
        $region54: #{tpu_custom_call.1} parent=51 // pred_check_branch
          %1262 = sbr.rel (%p1260) target = $region56
        $region55: #{tpu_custom_call.1} parent=51 // pred_region
          %s1263 = sand.u32 %s106, 1
          %s1264 = scalar_lea.sflag [#allocation5], %s1263
          %s1265 = sand.u32 %s106, 1
          %s1266 = smul.addr %s1265, 128
          %s1267 = scalar_lea.vmem [#allocation8], %s1266
          %1269 = dma.done %s1264, 2048
        $region56: #{tpu_custom_call.1} parent=51 // pred_fallthru
          _
      $region52: #{tpu_custom_call.1} parent=5 // pred_fallthru
        _
    $region6: #{tpu_custom_call.1} parent=1 // loop_footer
      %s19 = sadd.s32 1, %s15
    $region7: #{tpu_custom_call.1} parent=1 // loop_footer_branch
      %14 = sbr.rel target = $region3
    $region8: #{tpu_custom_call.1} parent=1 // loop_exit
      _
    %1270 = vsyncpa [#allocation4], 1
    %s1271 = scalar_lea.sflag [#allocation4], 1
    %1272 = vsyncpa %s1271, 1
    %1273 = vsyncpa [#allocation7], 1
    %1274 = vsyncpa [#allocation5], 1
    %s1275 = scalar_lea.sflag [#allocation5], 1
    %1276 = vsyncpa %s1275, 1

</llo_original>
